<compile_context>
chip_gen: v7x
topology: tpu7x:2x2x1
jax: 0.10.0
libtpu: 0.0.40
codegen_flags: <defaults>
</compile_context>

<pallas_src>
from functools import partial

import jax
import jax.numpy as jnp
from jax.experimental import pallas as pl
from jax.experimental.pallas import tpu as pltpu


# ----------------------------------------------------------------------------
# Pallas kernel: full planning-horizon rollout + reward + return accumulation
# for one block of candidates.  Grid axis 0 = candidate row-block ('parallel').
# ----------------------------------------------------------------------------
def rollout_kernel(
    bs0_ref,      # (BN, H+Z)    packed initial [belief | state]
    actp_ref,     # (T, BN, H)   pre-projected actions (actions @ W_ab), resident
    W_tr_ref,     # (H+Z, H)     packed transition weight [W_bb; W_sb]
    b_b_ref,      # (1, H)
    W_bs_ref,     # (H, Z)       state head
    b_s_ref,      # (1, Z)
    W_r1_ref,     # (H+Z, R)     packed reward-hidden weight [W_r1b; W_r1s]
    b_r1_ref,     # (1, R)
    w_r2_ref,     # (1, R)       reward output row (final projection weights)
    b_r2_ref,     # (1, 1)       reward output bias, SMEM scalar
    ret_ref,      # (BN, 1)      output: summed returns per candidate
):
    T = actp_ref.shape[0]
    R = W_r1_ref.shape[1]
    BN = bs0_ref.shape[0]

    def step(t, carry):
        # Latent carried in vregs: x = packed [belief | state]; h_acc = sum of reward
        # hidden activations (reward output is linear in h, so project once at the end).
        x, h_acc = carry

        # Transition: packed matmul over [belief|state]; action contribution was
        # pre-projected in the wrapper and is just added here.
        belief = jnp.tanh(
            jnp.dot(x, W_tr_ref[...], preferred_element_type=jnp.float32)
            + actp_ref[t]
            + b_b_ref[...]
        )                                                   # (BN, H)
        state = jnp.tanh(
            jnp.dot(belief, W_bs_ref[...], preferred_element_type=jnp.float32)
            + b_s_ref[...]
        )                                                   # (BN, Z)

        # Rebuild packed latent as a vreg value (lane shift + select, no VMEM traffic).
        x_new = jnp.concatenate([belief, state], axis=-1)   # (BN, H+Z)

        # Reward hidden layer; accumulate, don't reduce inside the loop.
        h = jnp.maximum(
            jnp.dot(x_new, W_r1_ref[...], preferred_element_type=jnp.float32)
            + b_r1_ref[...],
            0.0,
        )                                                   # (BN, R)
        return x_new, h_acc + h

    x0 = bs0_ref[...]
    h0 = jnp.zeros((BN, R), jnp.float32)
    _, h_acc = jax.lax.fori_loop(0, T, step, (x0, h0), unroll=min(T, 4))

    # Hoisted reward output projection: single cross-lane reduction per block.
    # TODO(synk): at large N emit a lane-dense (1, BN) row instead of (BN, 1).
    ret_ref[...] = (
        jnp.sum(h_acc * w_r2_ref[...], axis=-1, keepdims=True)
        + T * b_r2_ref[0, 0]
    )


def _padded_tile_bytes(shape, itemsize=4):
    """Bytes of one (8,128)-padded f32 VMEM tile for a block of this shape."""
    shape = tuple(shape)
    if len(shape) == 1:
        shape = (1,) + shape
    lead = 1
    for d in shape[:-2]:
        lead *= d
    rows = -(-shape[-2] // 8) * 8
    cols = -(-shape[-1] // 128) * 128
    return lead * rows * cols * itemsize


def rollout_returns(belief0, state0, actions, p):
    """Per-candidate sum of rewards over the planning horizon, shape (N,)."""
    T, N, A = actions.shape
    H = belief0.shape[1]
    Z = state0.shape[1]
    HZ = H + Z
    R = p["W_r1"].shape[1]

    # Action pre-projection in the wrapper: one fused, lane-dense XLA matmul.
    # Drops A from the in-kernel contraction and removes the per-step action pack.
    act_proj = (actions.reshape(T * N, A) @ p["W_ab"]).reshape(T, N, H)

    bs0 = jnp.concatenate([belief0, state0], axis=-1)       # (N, H+Z)

    # Grid: single step on single-TC chips / small N.  Only split candidates across
    # blocks when each block keeps >= 256 rows (v7x megacore can then genuinely 2x).
    NB = 2 if (N >= 512 and (N // 2) % 8 == 0) else 1
    BN = N // NB

    full2 = lambda r, c: pl.BlockSpec((r, c), lambda i: (0, 0))

    # Explicit VMEM budget (padded, double-buffered) -- only passed when it exceeds
    # the 16 MiB scoped default (i.e. at production PlaNet sizes, not this demo).
    block_shapes = [
        (BN, HZ), (T, BN, H), (HZ, H), (1, H), (H, Z), (1, Z),
        (HZ, R), (1, R), (1, R), (BN, 1),
    ]
    est_bytes = 2 * sum(_padded_tile_bytes(s) for s in block_shapes) + (2 << 20)
    vmem_limit = int(min(est_bytes, 100 << 20)) if est_bytes > (16 << 20) else None

    out = pl.pallas_call(
        rollout_kernel,
        out_shape=jax.ShapeDtypeStruct((N, 1), jnp.float32),
        grid_spec=pltpu.PrefetchScalarGridSpec(
            num_scalar_prefetch=0,
            grid=(NB,),
            in_specs=[
                pl.BlockSpec((BN, HZ), lambda i: (i, 0)),       # packed [belief|state]
                pl.BlockSpec((T, BN, H), lambda i: (0, i, 0)),  # pre-projected actions
                full2(HZ, H), full2(1, H),                      # W_tr, b_b
                full2(H, Z), full2(1, Z),                       # W_bs, b_s
                full2(HZ, R), full2(1, R),                      # W_r1, b_r1
                full2(1, R),                                    # w_r2 row
                pl.BlockSpec(memory_space=pltpu.MemorySpace.SMEM),  # b_r2 scalar
            ],
            out_specs=pl.BlockSpec((BN, 1), lambda i: (i, 0)),
        ),
        compiler_params=pltpu.CompilerParams(
            dimension_semantics=("parallel",),
            vmem_limit_bytes=vmem_limit,
        ),
    )(
        bs0, act_proj,
        p["W_tr"], p["b_b"], p["W_bs"], p["b_s"],
        p["W_r1"], p["b_r1"], p["w_r2_row"], p["b_r2"],
    )
    return out[:, 0]


def rollout_returns_ref(belief0, state0, actions, p):
    """Pure-JAX reference of the same rollout (for the out-of-loop sanity check)."""
    b, s = belief0, state0
    ret = jnp.zeros((belief0.shape[0],), jnp.float32)
    for t in range(actions.shape[0]):
        x = jnp.concatenate([b, s], axis=-1)
        b = jnp.tanh(x @ p["W_tr"] + actions[t] @ p["W_ab"] + p["b_b"])
        s = jnp.tanh(b @ p["W_bs"] + p["b_s"])
        h = jnp.maximum(jnp.concatenate([b, s], axis=-1) @ p["W_r1"] + p["b_r1"], 0.0)
        ret = ret + jnp.sum(h * p["w_r2_row"], axis=-1) + p["b_r2"][0, 0]
    return ret


# ----------------------------------------------------------------------------
# MPCPlanner.forward (continuous mode).  Whole CEM loop is jitted; rollouts in Pallas.
# ----------------------------------------------------------------------------
@partial(
    jax.jit,
    static_argnames=(
        "action_size", "planning_horizon", "optimisation_iters",
        "candidates", "top_candidates",
    ),
)
def mpc_plan(belief, state, params, key, *, action_size, planning_horizon,
             optimisation_iters, candidates, top_candidates):
    B, H = belief.shape
    Z = state.shape[1]

    # belief/state: (B, F) -> expand over candidates -> (B*C, F)
    belief_x = jnp.broadcast_to(belief[:, None, :], (B, candidates, H)).reshape(-1, H)
    state_x = jnp.broadcast_to(state[:, None, :], (B, candidates, Z)).reshape(-1, Z)

    action_mean = jnp.zeros((planning_horizon, B, 1, action_size), jnp.float32)
    action_std = jnp.ones((planning_horizon, B, 1, action_size), jnp.float32)

    for _ in range(optimisation_iters):
        key, sub = jax.random.split(key)
        noise = jax.random.normal(
            sub, (planning_horizon, B, candidates, action_size), jnp.float32)
        actions = (action_mean + action_std * noise).reshape(
            planning_horizon, B * candidates, action_size)

        returns = rollout_returns(belief_x, state_x, actions, params)  # (B*C,)

        _, topk = jax.lax.top_k(returns.reshape(B, candidates), top_candidates)
        flat_idx = (topk + candidates * jnp.arange(B)[:, None]).reshape(-1)
        best = actions[:, flat_idx, :].reshape(
            planning_horizon, B, top_candidates, action_size)
        action_mean = best.mean(axis=2, keepdims=True)
        action_std = best.std(axis=2, keepdims=True)  # ddof=0 == torch unbiased=False

    return action_mean[0].squeeze(1)  # (B, action_size)


def make_params(key, H, Z, A, R):
    ks = jax.random.split(key, 11)
    n = lambda k, s, scale=0.1: (scale * jax.random.normal(k, s)).astype(jnp.float32)
    W_bb, W_sb, W_ab = n(ks[0], (H, H)), n(ks[1], (Z, H)), n(ks[2], (A, H))
    W_r1b, W_r1s = n(ks[6], (H, R)), n(ks[7], (Z, R))
    return {
        # packed transition weight over the latent only: rows = [belief | state]
        "W_tr": jnp.concatenate([W_bb, W_sb], axis=0),         # (H+Z, H)
        # action contribution is pre-projected in the wrapper
        "W_ab": W_ab,                                          # (A, H)
        "b_b": n(ks[3], (1, H)),
        "W_bs": n(ks[4], (H, Z)), "b_s": n(ks[5], (1, Z)),
        # packed reward-hidden weight: rows = [belief | state]
        "W_r1": jnp.concatenate([W_r1b, W_r1s], axis=0),       # (H+Z, R)
        "b_r1": n(ks[8], (1, R)),
        "w_r2_row": n(ks[9], (1, R)),                          # row form
        "b_r2": n(ks[10], (1, 1)),
    }


if __name__ == "__main__":
    # Small, forward-consistent shapes.
    B = 2                 # batch
    H = 32                # belief (deterministic hidden) size
    Z = 16                # state (stochastic latent) size
    A = 4                 # action_size
    R = 24                # reward-model hidden size
    planning_horizon = 4
    optimisation_iters = 2
    candidates = 8
    top_candidates = 3

    root = jax.random.PRNGKey(0)
    k_param, k_belief, k_state, k_check, k_plan = jax.random.split(root, 5)

    params = make_params(k_param, H, Z, A, R)
    belief = jax.random.normal(k_belief, (B, H), jnp.float32)
    state = jax.random.normal(k_state, (B, Z), jnp.float32)

    # One-time kernel-vs-reference correctness check, OUTSIDE the (jitted) CEM loop.
    N = B * candidates
    belief_x = jnp.broadcast_to(belief[:, None, :], (B, candidates, H)).reshape(-1, H)
    state_x = jnp.broadcast_to(state[:, None, :], (B, candidates, Z)).reshape(-1, Z)
    actions_chk = jax.random.normal(
        k_check, (planning_horizon, N, A), jnp.float32)
    got = rollout_returns(belief_x, state_x, actions_chk, params)
    ref = rollout_returns_ref(belief_x, state_x, actions_chk, params)
    assert bool(jnp.allclose(got, ref, rtol=1e-3, atol=1e-3)), "kernel mismatch"

    out = mpc_plan(
        belief, state, params, k_plan,
        action_size=A, planning_horizon=planning_horizon,
        optimisation_iters=optimisation_iters, candidates=candidates,
        top_candidates=top_candidates,
    )
    out = jax.block_until_ready(out)
    assert out.shape == (B, A)
    print("KERNEL_OK")
</pallas_src>

<mosaic_0001>
module attributes {stable_mosaic.version = 11 : i64} {
  func.func @rollout_kernel(%arg0: i32, %arg1: memref<16x48xf32, #tpu.memory_space<vmem>>, %arg2: memref<4x16x32xf32, #tpu.memory_space<vmem>>, %arg3: memref<48x32xf32, #tpu.memory_space<vmem>>, %arg4: memref<1x32xf32, #tpu.memory_space<vmem>>, %arg5: memref<32x16xf32, #tpu.memory_space<vmem>>, %arg6: memref<1x16xf32, #tpu.memory_space<vmem>>, %arg7: memref<48x24xf32, #tpu.memory_space<vmem>>, %arg8: memref<1x24xf32, #tpu.memory_space<vmem>>, %arg9: memref<1x24xf32, #tpu.memory_space<vmem>>, %arg10: memref<1x1xf32, #tpu.memory_space<smem>>, %arg11: memref<16x1xf32, #tpu.memory_space<vmem>>) attributes {dimension_semantics = [#tpu.dimension_semantics<parallel>], iteration_bounds = array<i64: 1>, scalar_prefetch = 0 : i64, scratch_operands = 0 : i64, tpu.core_type = #tpu.core_type<tc>, window_params = [{transform_indices = @transform_0, window_bounds = array<i64: 16, 48>}, {transform_indices = @transform_1, window_bounds = array<i64: 4, 16, 32>}, {pipeline_mode = #tpu.pipeline_mode<synchronous>, transform_indices = @transform_2, window_bounds = array<i64: 48, 32>}, {pipeline_mode = #tpu.pipeline_mode<synchronous>, transform_indices = @transform_3, window_bounds = array<i64: 1, 32>}, {pipeline_mode = #tpu.pipeline_mode<synchronous>, transform_indices = @transform_4, window_bounds = array<i64: 32, 16>}, {pipeline_mode = #tpu.pipeline_mode<synchronous>, transform_indices = @transform_5, window_bounds = array<i64: 1, 16>}, {pipeline_mode = #tpu.pipeline_mode<synchronous>, transform_indices = @transform_6, window_bounds = array<i64: 48, 24>}, {pipeline_mode = #tpu.pipeline_mode<synchronous>, transform_indices = @transform_7, window_bounds = array<i64: 1, 24>}, {pipeline_mode = #tpu.pipeline_mode<synchronous>, transform_indices = @transform_8, window_bounds = array<i64: 1, 24>}, {transform_indices = @transform_9, window_bounds = array<i64: 1, 1>}, {transform_indices = @transform_10, window_bounds = array<i64: 16, 1>}]} {
    %c0 = arith.constant 0 : index
    %c0_0 = arith.constant 0 : index
    %0 = vector.load %arg1[%c0, %c0_0] : memref<16x48xf32, #tpu.memory_space<vmem>>, vector<16x48xf32>
    %cst = arith.constant 0.000000e+00 : f32
    %1 = vector.broadcast %cst : f32 to vector<16x24xf32>
    %c0_i32 = arith.constant 0 : i32
    %c0_1 = arith.constant 0 : index
    %c0_2 = arith.constant 0 : index
    %2 = vector.load %arg3[%c0_1, %c0_2] : memref<48x32xf32, #tpu.memory_space<vmem>>, vector<48x32xf32>
    %cst_3 = arith.constant dense<0.000000e+00> : vector<16x32xf32>
    %3 = tpu.matmul %0, %2, %cst_3 {dimension_numbers = #tpu.dot_dimension_numbers<[1], [0], [0], [1], [0, 0, 1, 1], [], []>} : vector<16x48xf32>, vector<48x32xf32>, vector<16x32xf32> -> vector<16x32xf32>
    %4 = arith.index_cast %c0_i32 : i32 to index
    %c0_4 = arith.constant 0 : index
    %c0_5 = arith.constant 0 : index
    %5 = vector.load %arg2[%4, %c0_4, %c0_5] : memref<4x16x32xf32, #tpu.memory_space<vmem>>, vector<1x16x32xf32>
    %6 = vector.shape_cast %5 : vector<1x16x32xf32> to vector<16x32xf32>
    %7 = arith.addf %3, %6 : vector<16x32xf32>
    %c0_6 = arith.constant 0 : index
    %c0_7 = arith.constant 0 : index
    %8 = vector.load %arg4[%c0_6, %c0_7] : memref<1x32xf32, #tpu.memory_space<vmem>>, vector<1x32xf32>
    %9 = vector.broadcast %8 : vector<1x32xf32> to vector<16x32xf32>
    %10 = arith.addf %7, %9 : vector<16x32xf32>
    %11 = math.tanh %10 : vector<16x32xf32>
    %c0_8 = arith.constant 0 : index
    %c0_9 = arith.constant 0 : index
    %12 = vector.load %arg5[%c0_8, %c0_9] : memref<32x16xf32, #tpu.memory_space<vmem>>, vector<32x16xf32>
    %cst_10 = arith.constant dense<0.000000e+00> : vector<16x16xf32>
    %13 = tpu.matmul %11, %12, %cst_10 {dimension_numbers = #tpu.dot_dimension_numbers<[1], [0], [0], [1], [0, 0, 1, 1], [], []>} : vector<16x32xf32>, vector<32x16xf32>, vector<16x16xf32> -> vector<16x16xf32>
    %c0_11 = arith.constant 0 : index
    %c0_12 = arith.constant 0 : index
    %14 = vector.load %arg6[%c0_11, %c0_12] : memref<1x16xf32, #tpu.memory_space<vmem>>, vector<1x16xf32>
    %15 = vector.broadcast %14 : vector<1x16xf32> to vector<16x16xf32>
    %16 = arith.addf %13, %15 : vector<16x16xf32>
    %17 = math.tanh %16 : vector<16x16xf32>
    %18 = tpu.concatenate %11, %17 in 1 : vector<16x32xf32>, vector<16x16xf32> -> vector<16x48xf32>
    %c0_13 = arith.constant 0 : index
    %c0_14 = arith.constant 0 : index
    %19 = vector.load %arg7[%c0_13, %c0_14] : memref<48x24xf32, #tpu.memory_space<vmem>>, vector<48x24xf32>
    %cst_15 = arith.constant dense<0.000000e+00> : vector<16x24xf32>
    %20 = tpu.matmul %18, %19, %cst_15 {dimension_numbers = #tpu.dot_dimension_numbers<[1], [0], [0], [1], [0, 0, 1, 1], [], []>} : vector<16x48xf32>, vector<48x24xf32>, vector<16x24xf32> -> vector<16x24xf32>
    %c0_16 = arith.constant 0 : index
    %c0_17 = arith.constant 0 : index
    %21 = vector.load %arg8[%c0_16, %c0_17] : memref<1x24xf32, #tpu.memory_space<vmem>>, vector<1x24xf32>
    %22 = vector.broadcast %21 : vector<1x24xf32> to vector<16x24xf32>
    %23 = arith.addf %20, %22 : vector<16x24xf32>
    %cst_18 = arith.constant 0.000000e+00 : f32
    %24 = vector.broadcast %cst_18 : f32 to vector<16x24xf32>
    %25 = arith.maximumf %23, %24 : vector<16x24xf32>
    %26 = arith.addf %1, %25 : vector<16x24xf32>
    %c1_i32 = arith.constant 1 : i32
    %c0_19 = arith.constant 0 : index
    %c0_20 = arith.constant 0 : index
    %27 = vector.load %arg3[%c0_19, %c0_20] : memref<48x32xf32, #tpu.memory_space<vmem>>, vector<48x32xf32>
    %cst_21 = arith.constant dense<0.000000e+00> : vector<16x32xf32>
    %28 = tpu.matmul %18, %27, %cst_21 {dimension_numbers = #tpu.dot_dimension_numbers<[1], [0], [0], [1], [0, 0, 1, 1], [], []>} : vector<16x48xf32>, vector<48x32xf32>, vector<16x32xf32> -> vector<16x32xf32>
    %29 = arith.index_cast %c1_i32 : i32 to index
    %c0_22 = arith.constant 0 : index
    %c0_23 = arith.constant 0 : index
    %30 = vector.load %arg2[%29, %c0_22, %c0_23] : memref<4x16x32xf32, #tpu.memory_space<vmem>>, vector<1x16x32xf32>
    %31 = vector.shape_cast %30 : vector<1x16x32xf32> to vector<16x32xf32>
    %32 = arith.addf %28, %31 : vector<16x32xf32>
    %c0_24 = arith.constant 0 : index
    %c0_25 = arith.constant 0 : index
    %33 = vector.load %arg4[%c0_24, %c0_25] : memref<1x32xf32, #tpu.memory_space<vmem>>, vector<1x32xf32>
    %34 = vector.broadcast %33 : vector<1x32xf32> to vector<16x32xf32>
    %35 = arith.addf %32, %34 : vector<16x32xf32>
    %36 = math.tanh %35 : vector<16x32xf32>
    %c0_26 = arith.constant 0 : index
    %c0_27 = arith.constant 0 : index
    %37 = vector.load %arg5[%c0_26, %c0_27] : memref<32x16xf32, #tpu.memory_space<vmem>>, vector<32x16xf32>
    %cst_28 = arith.constant dense<0.000000e+00> : vector<16x16xf32>
    %38 = tpu.matmul %36, %37, %cst_28 {dimension_numbers = #tpu.dot_dimension_numbers<[1], [0], [0], [1], [0, 0, 1, 1], [], []>} : vector<16x32xf32>, vector<32x16xf32>, vector<16x16xf32> -> vector<16x16xf32>
    %c0_29 = arith.constant 0 : index
    %c0_30 = arith.constant 0 : index
    %39 = vector.load %arg6[%c0_29, %c0_30] : memref<1x16xf32, #tpu.memory_space<vmem>>, vector<1x16xf32>
    %40 = vector.broadcast %39 : vector<1x16xf32> to vector<16x16xf32>
    %41 = arith.addf %38, %40 : vector<16x16xf32>
    %42 = math.tanh %41 : vector<16x16xf32>
    %43 = tpu.concatenate %36, %42 in 1 : vector<16x32xf32>, vector<16x16xf32> -> vector<16x48xf32>
    %c0_31 = arith.constant 0 : index
    %c0_32 = arith.constant 0 : index
    %44 = vector.load %arg7[%c0_31, %c0_32] : memref<48x24xf32, #tpu.memory_space<vmem>>, vector<48x24xf32>
    %cst_33 = arith.constant dense<0.000000e+00> : vector<16x24xf32>
    %45 = tpu.matmul %43, %44, %cst_33 {dimension_numbers = #tpu.dot_dimension_numbers<[1], [0], [0], [1], [0, 0, 1, 1], [], []>} : vector<16x48xf32>, vector<48x24xf32>, vector<16x24xf32> -> vector<16x24xf32>
    %c0_34 = arith.constant 0 : index
    %c0_35 = arith.constant 0 : index
    %46 = vector.load %arg8[%c0_34, %c0_35] : memref<1x24xf32, #tpu.memory_space<vmem>>, vector<1x24xf32>
    %47 = vector.broadcast %46 : vector<1x24xf32> to vector<16x24xf32>
    %48 = arith.addf %45, %47 : vector<16x24xf32>
    %cst_36 = arith.constant 0.000000e+00 : f32
    %49 = vector.broadcast %cst_36 : f32 to vector<16x24xf32>
    %50 = arith.maximumf %48, %49 : vector<16x24xf32>
    %51 = arith.addf %26, %50 : vector<16x24xf32>
    %c2_i32 = arith.constant 2 : i32
    %c0_37 = arith.constant 0 : index
    %c0_38 = arith.constant 0 : index
    %52 = vector.load %arg3[%c0_37, %c0_38] : memref<48x32xf32, #tpu.memory_space<vmem>>, vector<48x32xf32>
    %cst_39 = arith.constant dense<0.000000e+00> : vector<16x32xf32>
    %53 = tpu.matmul %43, %52, %cst_39 {dimension_numbers = #tpu.dot_dimension_numbers<[1], [0], [0], [1], [0, 0, 1, 1], [], []>} : vector<16x48xf32>, vector<48x32xf32>, vector<16x32xf32> -> vector<16x32xf32>
    %54 = arith.index_cast %c2_i32 : i32 to index
    %c0_40 = arith.constant 0 : index
    %c0_41 = arith.constant 0 : index
    %55 = vector.load %arg2[%54, %c0_40, %c0_41] : memref<4x16x32xf32, #tpu.memory_space<vmem>>, vector<1x16x32xf32>
    %56 = vector.shape_cast %55 : vector<1x16x32xf32> to vector<16x32xf32>
    %57 = arith.addf %53, %56 : vector<16x32xf32>
    %c0_42 = arith.constant 0 : index
    %c0_43 = arith.constant 0 : index
    %58 = vector.load %arg4[%c0_42, %c0_43] : memref<1x32xf32, #tpu.memory_space<vmem>>, vector<1x32xf32>
    %59 = vector.broadcast %58 : vector<1x32xf32> to vector<16x32xf32>
    %60 = arith.addf %57, %59 : vector<16x32xf32>
    %61 = math.tanh %60 : vector<16x32xf32>
    %c0_44 = arith.constant 0 : index
    %c0_45 = arith.constant 0 : index
    %62 = vector.load %arg5[%c0_44, %c0_45] : memref<32x16xf32, #tpu.memory_space<vmem>>, vector<32x16xf32>
    %cst_46 = arith.constant dense<0.000000e+00> : vector<16x16xf32>
    %63 = tpu.matmul %61, %62, %cst_46 {dimension_numbers = #tpu.dot_dimension_numbers<[1], [0], [0], [1], [0, 0, 1, 1], [], []>} : vector<16x32xf32>, vector<32x16xf32>, vector<16x16xf32> -> vector<16x16xf32>
    %c0_47 = arith.constant 0 : index
    %c0_48 = arith.constant 0 : index
    %64 = vector.load %arg6[%c0_47, %c0_48] : memref<1x16xf32, #tpu.memory_space<vmem>>, vector<1x16xf32>
    %65 = vector.broadcast %64 : vector<1x16xf32> to vector<16x16xf32>
    %66 = arith.addf %63, %65 : vector<16x16xf32>
    %67 = math.tanh %66 : vector<16x16xf32>
    %68 = tpu.concatenate %61, %67 in 1 : vector<16x32xf32>, vector<16x16xf32> -> vector<16x48xf32>
    %c0_49 = arith.constant 0 : index
    %c0_50 = arith.constant 0 : index
    %69 = vector.load %arg7[%c0_49, %c0_50] : memref<48x24xf32, #tpu.memory_space<vmem>>, vector<48x24xf32>
    %cst_51 = arith.constant dense<0.000000e+00> : vector<16x24xf32>
    %70 = tpu.matmul %68, %69, %cst_51 {dimension_numbers = #tpu.dot_dimension_numbers<[1], [0], [0], [1], [0, 0, 1, 1], [], []>} : vector<16x48xf32>, vector<48x24xf32>, vector<16x24xf32> -> vector<16x24xf32>
    %c0_52 = arith.constant 0 : index
    %c0_53 = arith.constant 0 : index
    %71 = vector.load %arg8[%c0_52, %c0_53] : memref<1x24xf32, #tpu.memory_space<vmem>>, vector<1x24xf32>
    %72 = vector.broadcast %71 : vector<1x24xf32> to vector<16x24xf32>
    %73 = arith.addf %70, %72 : vector<16x24xf32>
    %cst_54 = arith.constant 0.000000e+00 : f32
    %74 = vector.broadcast %cst_54 : f32 to vector<16x24xf32>
    %75 = arith.maximumf %73, %74 : vector<16x24xf32>
    %76 = arith.addf %51, %75 : vector<16x24xf32>
    %c3_i32 = arith.constant 3 : i32
    %c0_55 = arith.constant 0 : index
    %c0_56 = arith.constant 0 : index
    %77 = vector.load %arg3[%c0_55, %c0_56] : memref<48x32xf32, #tpu.memory_space<vmem>>, vector<48x32xf32>
    %cst_57 = arith.constant dense<0.000000e+00> : vector<16x32xf32>
    %78 = tpu.matmul %68, %77, %cst_57 {dimension_numbers = #tpu.dot_dimension_numbers<[1], [0], [0], [1], [0, 0, 1, 1], [], []>} : vector<16x48xf32>, vector<48x32xf32>, vector<16x32xf32> -> vector<16x32xf32>
    %79 = arith.index_cast %c3_i32 : i32 to index
    %c0_58 = arith.constant 0 : index
    %c0_59 = arith.constant 0 : index
    %80 = vector.load %arg2[%79, %c0_58, %c0_59] : memref<4x16x32xf32, #tpu.memory_space<vmem>>, vector<1x16x32xf32>
    %81 = vector.shape_cast %80 : vector<1x16x32xf32> to vector<16x32xf32>
    %82 = arith.addf %78, %81 : vector<16x32xf32>
    %c0_60 = arith.constant 0 : index
    %c0_61 = arith.constant 0 : index
    %83 = vector.load %arg4[%c0_60, %c0_61] : memref<1x32xf32, #tpu.memory_space<vmem>>, vector<1x32xf32>
    %84 = vector.broadcast %83 : vector<1x32xf32> to vector<16x32xf32>
    %85 = arith.addf %82, %84 : vector<16x32xf32>
    %86 = math.tanh %85 : vector<16x32xf32>
    %c0_62 = arith.constant 0 : index
    %c0_63 = arith.constant 0 : index
    %87 = vector.load %arg5[%c0_62, %c0_63] : memref<32x16xf32, #tpu.memory_space<vmem>>, vector<32x16xf32>
    %cst_64 = arith.constant dense<0.000000e+00> : vector<16x16xf32>
    %88 = tpu.matmul %86, %87, %cst_64 {dimension_numbers = #tpu.dot_dimension_numbers<[1], [0], [0], [1], [0, 0, 1, 1], [], []>} : vector<16x32xf32>, vector<32x16xf32>, vector<16x16xf32> -> vector<16x16xf32>
    %c0_65 = arith.constant 0 : index
    %c0_66 = arith.constant 0 : index
    %89 = vector.load %arg6[%c0_65, %c0_66] : memref<1x16xf32, #tpu.memory_space<vmem>>, vector<1x16xf32>
    %90 = vector.broadcast %89 : vector<1x16xf32> to vector<16x16xf32>
    %91 = arith.addf %88, %90 : vector<16x16xf32>
    %92 = math.tanh %91 : vector<16x16xf32>
    %93 = tpu.concatenate %86, %92 in 1 : vector<16x32xf32>, vector<16x16xf32> -> vector<16x48xf32>
    %c0_67 = arith.constant 0 : index
    %c0_68 = arith.constant 0 : index
    %94 = vector.load %arg7[%c0_67, %c0_68] : memref<48x24xf32, #tpu.memory_space<vmem>>, vector<48x24xf32>
    %cst_69 = arith.constant dense<0.000000e+00> : vector<16x24xf32>
    %95 = tpu.matmul %93, %94, %cst_69 {dimension_numbers = #tpu.dot_dimension_numbers<[1], [0], [0], [1], [0, 0, 1, 1], [], []>} : vector<16x48xf32>, vector<48x24xf32>, vector<16x24xf32> -> vector<16x24xf32>
    %c0_70 = arith.constant 0 : index
    %c0_71 = arith.constant 0 : index
    %96 = vector.load %arg8[%c0_70, %c0_71] : memref<1x24xf32, #tpu.memory_space<vmem>>, vector<1x24xf32>
    %97 = vector.broadcast %96 : vector<1x24xf32> to vector<16x24xf32>
    %98 = arith.addf %95, %97 : vector<16x24xf32>
    %cst_72 = arith.constant 0.000000e+00 : f32
    %99 = vector.broadcast %cst_72 : f32 to vector<16x24xf32>
    %100 = arith.maximumf %98, %99 : vector<16x24xf32>
    %101 = arith.addf %76, %100 : vector<16x24xf32>
    %c4_i32 = arith.constant 4 : i32
    %c0_73 = arith.constant 0 : index
    %c0_74 = arith.constant 0 : index
    %102 = vector.load %arg9[%c0_73, %c0_74] : memref<1x24xf32, #tpu.memory_space<vmem>>, vector<1x24xf32>
    %103 = vector.broadcast %102 : vector<1x24xf32> to vector<16x24xf32>
    %104 = arith.mulf %101, %103 : vector<16x24xf32>
    %cst_75 = arith.constant dense<0.000000e+00> : vector<16xf32>
    %105 = vector.multi_reduction <add>, %104, %cst_75 [1] : vector<16x24xf32> to vector<16xf32>
    %106 = vector.shape_cast %105 : vector<16xf32> to vector<16x1xf32>
    %c0_76 = arith.constant 0 : index
    %c0_77 = arith.constant 0 : index
    %107 = memref.load %arg10[%c0_76, %c0_77] : memref<1x1xf32, #tpu.memory_space<smem>>
    %cst_78 = arith.constant 4.000000e+00 : f32
    %108 = arith.mulf %cst_78, %107 : f32
    %109 = vector.broadcast %108 : f32 to vector<16x1xf32>
    %110 = arith.addf %106, %109 : vector<16x1xf32>
    %c0_79 = arith.constant 0 : index
    %c0_80 = arith.constant 0 : index
    %111 = vector.load %arg11[%c0_79, %c0_80] : memref<16x1xf32, #tpu.memory_space<vmem>>, vector<16x1xf32>
    tpu.vector_store %arg11[%c0_79, %c0_80], %110 {strides = array<i32>} : memref<16x1xf32, #tpu.memory_space<vmem>>, vector<16x1xf32>,
    return
  }
  func.func @transform_0(%arg0: i32) -> (i32, i32) {
    %c0_i32 = arith.constant 0 : i32
    %c0_i32_0 = arith.constant 0 : i32
    return %arg0, %c0_i32 : i32, i32
  }
  func.func @transform_1(%arg0: i32) -> (i32, i32, i32) {
    %c0_i32 = arith.constant 0 : i32
    %c0_i32_0 = arith.constant 0 : i32
    %c0_i32_1 = arith.constant 0 : i32
    return %c0_i32, %arg0, %c0_i32_0 : i32, i32, i32
  }
  func.func @transform_2(%arg0: i32) -> (i32, i32) {
    %c0_i32 = arith.constant 0 : i32
    %c0_i32_0 = arith.constant 0 : i32
    %c0_i32_1 = arith.constant 0 : i32
    return %c0_i32, %c0_i32_0 : i32, i32
  }
  func.func @transform_3(%arg0: i32) -> (i32, i32) {
    %c0_i32 = arith.constant 0 : i32
    %c0_i32_0 = arith.constant 0 : i32
    %c0_i32_1 = arith.constant 0 : i32
    return %c0_i32, %c0_i32_0 : i32, i32
  }
  func.func @transform_4(%arg0: i32) -> (i32, i32) {
    %c0_i32 = arith.constant 0 : i32
    %c0_i32_0 = arith.constant 0 : i32
    %c0_i32_1 = arith.constant 0 : i32
    return %c0_i32, %c0_i32_0 : i32, i32
  }
  func.func @transform_5(%arg0: i32) -> (i32, i32) {
    %c0_i32 = arith.constant 0 : i32
    %c0_i32_0 = arith.constant 0 : i32
    %c0_i32_1 = arith.constant 0 : i32
    return %c0_i32, %c0_i32_0 : i32, i32
  }
  func.func @transform_6(%arg0: i32) -> (i32, i32) {
    %c0_i32 = arith.constant 0 : i32
    %c0_i32_0 = arith.constant 0 : i32
    %c0_i32_1 = arith.constant 0 : i32
    return %c0_i32, %c0_i32_0 : i32, i32
  }
  func.func @transform_7(%arg0: i32) -> (i32, i32) {
    %c0_i32 = arith.constant 0 : i32
    %c0_i32_0 = arith.constant 0 : i32
    %c0_i32_1 = arith.constant 0 : i32
    return %c0_i32, %c0_i32_0 : i32, i32
  }
  func.func @transform_8(%arg0: i32) -> (i32, i32) {
    %c0_i32 = arith.constant 0 : i32
    %c0_i32_0 = arith.constant 0 : i32
    %c0_i32_1 = arith.constant 0 : i32
    return %c0_i32, %c0_i32_0 : i32, i32
  }
  func.func @transform_9(%arg0: i32) -> (i32, i32) {
    %c0_i32 = arith.constant 0 : i32
    %c0_i32_0 = arith.constant 0 : i32
    %c0_i32_1 = arith.constant 0 : i32
    return %c0_i32, %c0_i32_0 : i32, i32
  }
  func.func @transform_10(%arg0: i32) -> (i32, i32) {
    %c0_i32 = arith.constant 0 : i32
    %c0_i32_0 = arith.constant 0 : i32
    return %arg0, %c0_i32 : i32, i32
  }
}

</mosaic_0001>

<llo_original>
// kernel: tpu_custom_call.1
$region0: #{tpu_custom_call.1}
  #allocation0 [shape = 'u32[]', space=smem, size = 0x4, offset = 0x4, fixed_abs, tag = 'smem constant byte address 0x4 - core index']
  #allocation1 [shape = 'u32[144,128]{1,0:T(1,128)}', space=vmem, size = 0x12000, scoped, tag = 'internal scratch']
  #allocation2 [shape = 'f32[1,1]{1,0:T(1,128)S(6)}', space=smem, size = 0x200, scoped, tag = 'scoped memory for tpu_custom_call.1']
  %s0 = inlined_call_operand.vmem [shape: f32[16,48], index: 0, kind: input, shape index: {}]
  %s1 = inlined_call_operand.vmem [shape: f32[4,16,32], index: 1, kind: input, shape index: {}]
  %s2 = inlined_call_operand.vmem [shape: f32[48,32], index: 2, kind: input, shape index: {}]
  %s3 = inlined_call_operand.vmem [shape: f32[1,32], index: 3, kind: input, shape index: {}]
  %s4 = inlined_call_operand.vmem [shape: f32[32,16], index: 4, kind: input, shape index: {}]
  %s5 = inlined_call_operand.vmem [shape: f32[1,16], index: 5, kind: input, shape index: {}]
  %s6 = inlined_call_operand.vmem [shape: f32[48,24], index: 6, kind: input, shape index: {}]
  %s7 = inlined_call_operand.vmem [shape: f32[1,24], index: 7, kind: input, shape index: {}]
  %s8 = inlined_call_operand.vmem [shape: f32[1,24], index: 8, kind: input, shape index: {}]
  %s9 = inlined_call_operand.<no memory space> [shape: f32[1,1], index: 9, kind: input, shape index: {}]
  %s10 = inlined_call_operand.vmem [shape: f32[16,1], index: 10, kind: output, shape index: {}]
  %s11 = sld [smem:[#allocation0]]
  $region50: #{tpu_custom_call.1} parent=0
    _
  %s13 = ssub.s32 1, %s11
  %s14 = scalar_select 0, %s13, %s11
  %15 = sst [smem:[#allocation2]] %s9
  // Predicated region
  $region2: #{tpu_custom_call.1} parent=0 // pred_check
    _
  $region3: #{tpu_custom_call.1} parent=0 // pred_check_branch
    %17 = sbr.rel (0) target = $region5
  $region4: #{tpu_custom_call.1} parent=0 // pred_region
    _
  $region5: #{tpu_custom_call.1} parent=0 // pred_fallthru
    _
  // Predicated region
  $region6: #{tpu_custom_call.1} parent=0 // pred_check
    _
  $region7: #{tpu_custom_call.1} parent=0 // pred_check_branch
    %19 = sbr.rel (0) target = $region9
  $region8: #{tpu_custom_call.1} parent=0 // pred_region
    _
  $region9: #{tpu_custom_call.1} parent=0 // pred_fallthru
    _
  // Predicated region
  $region10: #{tpu_custom_call.1} parent=0 // pred_check
    _
  $region11: #{tpu_custom_call.1} parent=0 // pred_check_branch
    %21 = sbr.rel (0) target = $region13
  $region12: #{tpu_custom_call.1} parent=0 // pred_region
    _
  $region13: #{tpu_custom_call.1} parent=0 // pred_fallthru
    _
  // Predicated region
  $region14: #{tpu_custom_call.1} parent=0 // pred_check
    _
  $region15: #{tpu_custom_call.1} parent=0 // pred_check_branch
    %23 = sbr.rel (0) target = $region17
  $region16: #{tpu_custom_call.1} parent=0 // pred_region
    _
  $region17: #{tpu_custom_call.1} parent=0 // pred_fallthru
    _
  // Predicated region
  $region18: #{tpu_custom_call.1} parent=0 // pred_check
    _
  $region19: #{tpu_custom_call.1} parent=0 // pred_check_branch
    %25 = sbr.rel (0) target = $region21
  $region20: #{tpu_custom_call.1} parent=0 // pred_region
    _
  $region21: #{tpu_custom_call.1} parent=0 // pred_fallthru
    _
  // Predicated region
  $region22: #{tpu_custom_call.1} parent=0 // pred_check
    _
  $region23: #{tpu_custom_call.1} parent=0 // pred_check_branch
    %27 = sbr.rel (0) target = $region25
  $region24: #{tpu_custom_call.1} parent=0 // pred_region
    _
  $region25: #{tpu_custom_call.1} parent=0 // pred_fallthru
    _
  // Predicated region
  $region26: #{tpu_custom_call.1} parent=0 // pred_check
    _
  $region27: #{tpu_custom_call.1} parent=0 // pred_check_branch
    %29 = sbr.rel (0) target = $region29
  $region28: #{tpu_custom_call.1} parent=0 // pred_region
    _
  $region29: #{tpu_custom_call.1} parent=0 // pred_fallthru
    _
  // Predicated region
  $region30: #{tpu_custom_call.1} parent=0 // pred_check
    _
  $region31: #{tpu_custom_call.1} parent=0 // pred_check_branch
    %31 = sbr.rel (0) target = $region33
  $region32: #{tpu_custom_call.1} parent=0 // pred_region
    _
  $region33: #{tpu_custom_call.1} parent=0 // pred_fallthru
    _
  // Predicated region
  $region34: #{tpu_custom_call.1} parent=0 // pred_check
    _
  $region35: #{tpu_custom_call.1} parent=0 // pred_check_branch
    %33 = sbr.rel (0) target = $region37
  $region36: #{tpu_custom_call.1} parent=0 // pred_region
    _
  $region37: #{tpu_custom_call.1} parent=0 // pred_fallthru
    _
  // Predicated region
  $region38: #{tpu_custom_call.1} parent=0 // pred_check
    _
  $region39: #{tpu_custom_call.1} parent=0 // pred_check_branch
    %35 = sbr.rel (0) target = $region41
  $region40: #{tpu_custom_call.1} parent=0 // pred_region
    _
  $region41: #{tpu_custom_call.1} parent=0 // pred_fallthru
    _
  %v36 = vld [vmem:[%s0] sm:$0xff]
  %v37 = vld [vmem:[%s0 + $0x8] sm:$0xff]
  %v38 = vld [vmem:[%s2] sm:$0xff]
  %v39 = vld [vmem:[%s2 + $0x8] sm:$0xff]
  %v40 = vld [vmem:[%s2 + $0x10] sm:$0xff]
  %v41 = vld [vmem:[%s2 + $0x18] sm:$0xff]
  %v42 = vld [vmem:[%s2 + $0x20] sm:$0xff]
  %v43 = vld [vmem:[%s2 + $0x28] sm:$0xff]
  %v44 = vld [vmem:[%s1] sm:$0xff]
  %v45 = vld [vmem:[%s1 + $0x8] sm:$0xff]
  %vm46 = vcmask 392192
  %v48 = vsel %vm46, %v36, 0
  %v51 = vsel %vm46, %v37, 0
  %53 = vmatprep.subr.mxu0 0.0
  %54 = vmatpush1.msra.mxu0 %v38
  %55 = vmatprep.subr.mxu0 0.0
  %56 = vmatpush1.msra.mxu0 %v39
  %57 = vmatprep.subr.mxu0 0.0
  %58 = vmatpush1.msra.mxu0 %v40
  %59 = vmatprep.subr.mxu0 0.0
  %60 = vmatpush1.msra.mxu0 %v41
  %61 = vmatprep.subr.mxu0 0.0
  %62 = vmatpush1.msra.mxu0 %v42
  %63 = vmatprep.subr.mxu0 0.0
  %64 = vmatpush1.msra.mxu0 %v43
  %65 = vmatprep.subr.mxu0 0.0
  %66 = vmatpush1.msra.mxu0 0.0
  %67 = vmatprep.subr.mxu0 0.0
  %68 = vmatpush1.msra.mxu0 0.0
  %69 = vmatprep.subr.mxu0 0.0
  %70 = vmatpush1.msra.mxu0 0.0
  %71 = vmatprep.subr.mxu0 0.0
  %72 = vmatpush1.msra.mxu0 0.0
  %73 = vmatprep.subr.mxu0 0.0
  %74 = vmatpush1.msra.mxu0 0.0
  %75 = vmatprep.subr.mxu0 0.0
  %76 = vmatpush1.msra.mxu0 0.0
  %77 = vmatprep.subr.mxu0 0.0
  %78 = vmatpush1.msra.mxu0 0.0
  %79 = vmatprep.subr.mxu0 0.0
  %80 = vmatpush1.msra.mxu0 0.0
  %81 = vmatprep.subr.mxu0 0.0
  %82 = vmatpush1.msra.mxu0 0.0
  %83 = vmatprep.subr.mxu0 0.0
  %84 = vmatpush1.msra.mxu0 0.0
  %85 = vmatprep.subr.mxu0 0.0
  %86 = vmatpush1.msra.mxu0 0.0
  %87 = vmatprep.subr.mxu0 0.0
  %88 = vmatpush1.msra.mxu0 0.0
  %89 = vmatprep.subr.mxu0 0.0
  %90 = vmatpush1.msra.mxu0 0.0
  %91 = vmatprep.subr.mxu0 0.0
  %92 = vmatpush1.msra.mxu0 0.0
  %93 = vmatprep.subr.mxu0 0.0
  %94 = vmatpush1.msra.mxu0 0.0
  %95 = vmatprep.subr.mxu0 0.0
  %96 = vmatpush1.msra.mxu0 0.0
  %97 = vmatprep.subr.mxu0 0.0
  %98 = vmatpush1.msra.mxu0 0.0
  %99 = vmatprep.subr.mxu0 0.0
  %100 = vmatpush1.msra.mxu0 0.0
  %101 = vmatprep.subr.mxu0 0.0
  %102 = vmatpush1.msra.mxu0 0.0
  %103 = vmatprep.subr.mxu0 0.0
  %104 = vmatpush1.msra.mxu0 0.0
  %105 = vmatprep.subr.mxu0 0.0
  %106 = vmatpush1.msra.mxu0 0.0
  %107 = vmatprep.subr.mxu0 0.0
  %108 = vmatpush1.msra.mxu0 0.0
  %109 = vmatprep.subr.mxu0 0.0
  %110 = vmatpush1.msra.mxu0 0.0
  %111 = vmatprep.subr.mxu0 0.0
  %112 = vmatpush1.msra.mxu0 0.0
  %113 = vmatprep.subr.mxu0 0.0
  %114 = vmatpush1.msra.mxu0 0.0
  %115 = vmatprep.subr.mxu0 0.0
  %116 = vmatpush1.msra.mxu0 0.0
  %117 = vmatprep.mubr.f32.mxu0 0.0
  %118 = vmatmul.mubr.f32.gmra.mrb[0].mxu0 %v48
  %v119 = vpop.f32.mrb[0].mxu0
  %v120 = vadd.f32 %v44, %v119
  %v121 = vpop.f32.mrb[0].mxu0
  %122 = vmatprep.mubr.f32.mxu0 0.0
  %123 = vmatmul.mubr.f32.gmra.mrb[0].mxu0 %v51
  %v124 = vpop.f32.mrb[0].mxu0
  %v125 = vadd.f32 %v45, %v124
  %v126 = vpop.f32.mrb[0].mxu0
  %127 = vdwg.mxu0
  %v128 = vld [vmem:[%s3] sm:$0x1]
  %v130 = vlaneseq
  %v131 = vshrl.u32 %v130, 7
  %v132 = vsub.s32 0, %v131
  %v133 = vrot.slane %v128, %v132
  %v135 = vadd.f32 %v120, %v133
  %v136 = vadd.f32 %v125, %v133
  %v137 = vtanh.pop %v135
  %v138 = vtanh.pop %v136
  %v139 = vld [vmem:[%s4] sm:$0xff]
  %v140 = vld [vmem:[%s4 + $0x8] sm:$0xff]
  %v141 = vld [vmem:[%s4 + $0x10] sm:$0xff]
  %v142 = vld [vmem:[%s4 + $0x18] sm:$0xff]
  %v143 = vld [vmem:[%s5] sm:$0x1]
  %v145 = vlaneseq
  %v146 = vshrl.u32 %v145, 7
  %v147 = vsub.s32 0, %v146
  %v148 = vrot.slane %v143, %v147
  %vm150 = vcmask 261120
  %v152 = vsel %vm150, %v137, 0
  %v155 = vsel %vm150, %v138, 0
  %157 = vmatprep.subr.mxu0 0.0
  %158 = vmatpush1.msra.mxu0 %v139
  %159 = vmatprep.subr.mxu0 0.0
  %160 = vmatpush1.msra.mxu0 %v140
  %161 = vmatprep.subr.mxu0 0.0
  %162 = vmatpush1.msra.mxu0 %v141
  %163 = vmatprep.subr.mxu0 0.0
  %164 = vmatpush1.msra.mxu0 %v142
  %165 = vmatprep.subr.mxu0 0.0
  %166 = vmatpush1.msra.mxu0 0.0
  %167 = vmatprep.subr.mxu0 0.0
  %168 = vmatpush1.msra.mxu0 0.0
  %169 = vmatprep.subr.mxu0 0.0
  %170 = vmatpush1.msra.mxu0 0.0
  %171 = vmatprep.subr.mxu0 0.0
  %172 = vmatpush1.msra.mxu0 0.0
  %173 = vmatprep.subr.mxu0 0.0
  %174 = vmatpush1.msra.mxu0 0.0
  %175 = vmatprep.subr.mxu0 0.0
  %176 = vmatpush1.msra.mxu0 0.0
  %177 = vmatprep.subr.mxu0 0.0
  %178 = vmatpush1.msra.mxu0 0.0
  %179 = vmatprep.subr.mxu0 0.0
  %180 = vmatpush1.msra.mxu0 0.0
  %181 = vmatprep.subr.mxu0 0.0
  %182 = vmatpush1.msra.mxu0 0.0
  %183 = vmatprep.subr.mxu0 0.0
  %184 = vmatpush1.msra.mxu0 0.0
  %185 = vmatprep.subr.mxu0 0.0
  %186 = vmatpush1.msra.mxu0 0.0
  %187 = vmatprep.subr.mxu0 0.0
  %188 = vmatpush1.msra.mxu0 0.0
  %189 = vmatprep.subr.mxu0 0.0
  %190 = vmatpush1.msra.mxu0 0.0
  %191 = vmatprep.subr.mxu0 0.0
  %192 = vmatpush1.msra.mxu0 0.0
  %193 = vmatprep.subr.mxu0 0.0
  %194 = vmatpush1.msra.mxu0 0.0
  %195 = vmatprep.subr.mxu0 0.0
  %196 = vmatpush1.msra.mxu0 0.0
  %197 = vmatprep.subr.mxu0 0.0
  %198 = vmatpush1.msra.mxu0 0.0
  %199 = vmatprep.subr.mxu0 0.0
  %200 = vmatpush1.msra.mxu0 0.0
  %201 = vmatprep.subr.mxu0 0.0
  %202 = vmatpush1.msra.mxu0 0.0
  %203 = vmatprep.subr.mxu0 0.0
  %204 = vmatpush1.msra.mxu0 0.0
  %205 = vmatprep.subr.mxu0 0.0
  %206 = vmatpush1.msra.mxu0 0.0
  %207 = vmatprep.subr.mxu0 0.0
  %208 = vmatpush1.msra.mxu0 0.0
  %209 = vmatprep.subr.mxu0 0.0
  %210 = vmatpush1.msra.mxu0 0.0
  %211 = vmatprep.subr.mxu0 0.0
  %212 = vmatpush1.msra.mxu0 0.0
  %213 = vmatprep.subr.mxu0 0.0
  %214 = vmatpush1.msra.mxu0 0.0
  %215 = vmatprep.subr.mxu0 0.0
  %216 = vmatpush1.msra.mxu0 0.0
  %217 = vmatprep.subr.mxu0 0.0
  %218 = vmatpush1.msra.mxu0 0.0
  %219 = vmatprep.subr.mxu0 0.0
  %220 = vmatpush1.msra.mxu0 0.0
  %221 = vmatprep.mubr.f32.mxu0 0.0
  %222 = vmatmul.mubr.f32.gmra.mrb[0].mxu0 %v152
  %v223 = vpop.f32.mrb[0].mxu0
  %v224 = vadd.f32 %v148, %v223
  %v225 = vpop.f32.mrb[0].mxu0
  %226 = vmatprep.mubr.f32.mxu0 0.0
  %227 = vmatmul.mubr.f32.gmra.mrb[0].mxu0 %v155
  %v228 = vpop.f32.mrb[0].mxu0
  %v229 = vadd.f32 %v148, %v228
  %v230 = vpop.f32.mrb[0].mxu0
  %231 = vdwg.mxu0
  %v232 = vtanh.pop %v224
  %v233 = vtanh.pop %v229
  %236 = vrot.lane.b32.xlu0 %v232, 32
  %v237 = vpop.permute.xlu0 %236
  %238 = vrot.lane.b32.xlu0 %v233, 32
  %v239 = vpop.permute.xlu0 %238
  %v242 = vsel %vm150, %v137, %v237
  %v243 = vsel %vm150, %v138, %v239
  %v244 = vld [vmem:[%s6] sm:$0xff]
  %v245 = vld [vmem:[%s6 + $0x8] sm:$0xff]
  %v246 = vld [vmem:[%s6 + $0x10] sm:$0xff]
  %v247 = vld [vmem:[%s6 + $0x18] sm:$0xff]
  %v248 = vld [vmem:[%s6 + $0x20] sm:$0xff]
  %v249 = vld [vmem:[%s6 + $0x28] sm:$0xff]
  %v250 = vld [vmem:[%s7] sm:$0x1]
  %v252 = vlaneseq
  %v253 = vshrl.u32 %v252, 7
  %v254 = vsub.s32 0, %v253
  %v255 = vrot.slane %v250, %v254
  %v258 = vsel %vm46, %v242, 0
  %v261 = vsel %vm46, %v243, 0
  %263 = vmatprep.subr.mxu0 0.0
  %264 = vmatpush1.msra.mxu0 %v244
  %265 = vmatprep.subr.mxu0 0.0
  %266 = vmatpush1.msra.mxu0 %v245
  %267 = vmatprep.subr.mxu0 0.0
  %268 = vmatpush1.msra.mxu0 %v246
  %269 = vmatprep.subr.mxu0 0.0
  %270 = vmatpush1.msra.mxu0 %v247
  %271 = vmatprep.subr.mxu0 0.0
  %272 = vmatpush1.msra.mxu0 %v248
  %273 = vmatprep.subr.mxu0 0.0
  %274 = vmatpush1.msra.mxu0 %v249
  %275 = vmatprep.subr.mxu0 0.0
  %276 = vmatpush1.msra.mxu0 0.0
  %277 = vmatprep.subr.mxu0 0.0
  %278 = vmatpush1.msra.mxu0 0.0
  %279 = vmatprep.subr.mxu0 0.0
  %280 = vmatpush1.msra.mxu0 0.0
  %281 = vmatprep.subr.mxu0 0.0
  %282 = vmatpush1.msra.mxu0 0.0
  %283 = vmatprep.subr.mxu0 0.0
  %284 = vmatpush1.msra.mxu0 0.0
  %285 = vmatprep.subr.mxu0 0.0
  %286 = vmatpush1.msra.mxu0 0.0
  %287 = vmatprep.subr.mxu0 0.0
  %288 = vmatpush1.msra.mxu0 0.0
  %289 = vmatprep.subr.mxu0 0.0
  %290 = vmatpush1.msra.mxu0 0.0
  %291 = vmatprep.subr.mxu0 0.0
  %292 = vmatpush1.msra.mxu0 0.0
  %293 = vmatprep.subr.mxu0 0.0
  %294 = vmatpush1.msra.mxu0 0.0
  %295 = vmatprep.subr.mxu0 0.0
  %296 = vmatpush1.msra.mxu0 0.0
  %297 = vmatprep.subr.mxu0 0.0
  %298 = vmatpush1.msra.mxu0 0.0
  %299 = vmatprep.subr.mxu0 0.0
  %300 = vmatpush1.msra.mxu0 0.0
  %301 = vmatprep.subr.mxu0 0.0
  %302 = vmatpush1.msra.mxu0 0.0
  %303 = vmatprep.subr.mxu0 0.0
  %304 = vmatpush1.msra.mxu0 0.0
  %305 = vmatprep.subr.mxu0 0.0
  %306 = vmatpush1.msra.mxu0 0.0
  %307 = vmatprep.subr.mxu0 0.0
  %308 = vmatpush1.msra.mxu0 0.0
  %309 = vmatprep.subr.mxu0 0.0
  %310 = vmatpush1.msra.mxu0 0.0
  %311 = vmatprep.subr.mxu0 0.0
  %312 = vmatpush1.msra.mxu0 0.0
  %313 = vmatprep.subr.mxu0 0.0
  %314 = vmatpush1.msra.mxu0 0.0
  %315 = vmatprep.subr.mxu0 0.0
  %316 = vmatpush1.msra.mxu0 0.0
  %317 = vmatprep.subr.mxu0 0.0
  %318 = vmatpush1.msra.mxu0 0.0
  %319 = vmatprep.subr.mxu0 0.0
  %320 = vmatpush1.msra.mxu0 0.0
  %321 = vmatprep.subr.mxu0 0.0
  %322 = vmatpush1.msra.mxu0 0.0
  %323 = vmatprep.subr.mxu0 0.0
  %324 = vmatpush1.msra.mxu0 0.0
  %325 = vmatprep.subr.mxu0 0.0
  %326 = vmatpush1.msra.mxu0 0.0
  %327 = vmatprep.mubr.f32.mxu0 0.0
  %328 = vmatmul.mubr.f32.gmra.mrb[0].mxu0 %v258
  %v329 = vpop.f32.mrb[0].mxu0
  %v330 = vadd.f32 %v255, %v329
  %v331 = vpop.f32.mrb[0].mxu0
  %332 = vmatprep.mubr.f32.mxu0 0.0
  %333 = vmatmul.mubr.f32.gmra.mrb[0].mxu0 %v261
  %v334 = vpop.f32.mrb[0].mxu0
  %v335 = vadd.f32 %v255, %v334
  %v336 = vpop.f32.mrb[0].mxu0
  %337 = vdwg.mxu0
  %v338 = vmax.f32 %v330, 0.0
  %v339 = vmax.f32 %v335, 0.0
  %v340 = vadd.f32 %v338, 0.0
  %v341 = vadd.f32 %v339, 0.0
  %s342 = scalar_lea.vmem %s1, 16
  %v343 = vld [vmem:[%s342] sm:$0xff]
  %v344 = vld [vmem:[%s342 + $0x8] sm:$0xff]
  %345 = vmatprep.subr.mxu0 0.0
  %346 = vmatpush1.msra.mxu0 %v38
  %347 = vmatprep.subr.mxu0 0.0
  %348 = vmatpush1.msra.mxu0 %v39
  %349 = vmatprep.subr.mxu0 0.0
  %350 = vmatpush1.msra.mxu0 %v40
  %351 = vmatprep.subr.mxu0 0.0
  %352 = vmatpush1.msra.mxu0 %v41
  %353 = vmatprep.subr.mxu0 0.0
  %354 = vmatpush1.msra.mxu0 %v42
  %355 = vmatprep.subr.mxu0 0.0
  %356 = vmatpush1.msra.mxu0 %v43
  %357 = vmatprep.subr.mxu0 0.0
  %358 = vmatpush1.msra.mxu0 0.0
  %359 = vmatprep.subr.mxu0 0.0
  %360 = vmatpush1.msra.mxu0 0.0
  %361 = vmatprep.subr.mxu0 0.0
  %362 = vmatpush1.msra.mxu0 0.0
  %363 = vmatprep.subr.mxu0 0.0
  %364 = vmatpush1.msra.mxu0 0.0
  %365 = vmatprep.subr.mxu0 0.0
  %366 = vmatpush1.msra.mxu0 0.0
  %367 = vmatprep.subr.mxu0 0.0
  %368 = vmatpush1.msra.mxu0 0.0
  %369 = vmatprep.subr.mxu0 0.0
  %370 = vmatpush1.msra.mxu0 0.0
  %371 = vmatprep.subr.mxu0 0.0
  %372 = vmatpush1.msra.mxu0 0.0
  %373 = vmatprep.subr.mxu0 0.0
  %374 = vmatpush1.msra.mxu0 0.0
  %375 = vmatprep.subr.mxu0 0.0
  %376 = vmatpush1.msra.mxu0 0.0
  %377 = vmatprep.subr.mxu0 0.0
  %378 = vmatpush1.msra.mxu0 0.0
  %379 = vmatprep.subr.mxu0 0.0
  %380 = vmatpush1.msra.mxu0 0.0
  %381 = vmatprep.subr.mxu0 0.0
  %382 = vmatpush1.msra.mxu0 0.0
  %383 = vmatprep.subr.mxu0 0.0
  %384 = vmatpush1.msra.mxu0 0.0
  %385 = vmatprep.subr.mxu0 0.0
  %386 = vmatpush1.msra.mxu0 0.0
  %387 = vmatprep.subr.mxu0 0.0
  %388 = vmatpush1.msra.mxu0 0.0
  %389 = vmatprep.subr.mxu0 0.0
  %390 = vmatpush1.msra.mxu0 0.0
  %391 = vmatprep.subr.mxu0 0.0
  %392 = vmatpush1.msra.mxu0 0.0
  %393 = vmatprep.subr.mxu0 0.0
  %394 = vmatpush1.msra.mxu0 0.0
  %395 = vmatprep.subr.mxu0 0.0
  %396 = vmatpush1.msra.mxu0 0.0
  %397 = vmatprep.subr.mxu0 0.0
  %398 = vmatpush1.msra.mxu0 0.0
  %399 = vmatprep.subr.mxu0 0.0
  %400 = vmatpush1.msra.mxu0 0.0
  %401 = vmatprep.subr.mxu0 0.0
  %402 = vmatpush1.msra.mxu0 0.0
  %403 = vmatprep.subr.mxu0 0.0
  %404 = vmatpush1.msra.mxu0 0.0
  %405 = vmatprep.subr.mxu0 0.0
  %406 = vmatpush1.msra.mxu0 0.0
  %407 = vmatprep.subr.mxu0 0.0
  %408 = vmatpush1.msra.mxu0 0.0
  %409 = vmatprep.mubr.f32.mxu0 0.0
  %410 = vmatmul.mubr.f32.gmra.mrb[0].mxu0 %v258
  %v411 = vpop.f32.mrb[0].mxu0
  %v412 = vadd.f32 %v343, %v411
  %v413 = vpop.f32.mrb[0].mxu0
  %414 = vmatprep.mubr.f32.mxu0 0.0
  %415 = vmatmul.mubr.f32.gmra.mrb[0].mxu0 %v261
  %v416 = vpop.f32.mrb[0].mxu0
  %v417 = vadd.f32 %v344, %v416
  %v418 = vpop.f32.mrb[0].mxu0
  %419 = vdwg.mxu0
  %v420 = vadd.f32 %v412, %v133
  %v421 = vadd.f32 %v417, %v133
  %v422 = vtanh.pop %v420
  %v423 = vtanh.pop %v421
  %v425 = vsel %vm150, %v422, 0
  %v428 = vsel %vm150, %v423, 0
  %430 = vmatprep.subr.mxu0 0.0
  %431 = vmatpush1.msra.mxu0 %v139
  %432 = vmatprep.subr.mxu0 0.0
  %433 = vmatpush1.msra.mxu0 %v140
  %434 = vmatprep.subr.mxu0 0.0
  %435 = vmatpush1.msra.mxu0 %v141
  %436 = vmatprep.subr.mxu0 0.0
  %437 = vmatpush1.msra.mxu0 %v142
  %438 = vmatprep.subr.mxu0 0.0
  %439 = vmatpush1.msra.mxu0 0.0
  %440 = vmatprep.subr.mxu0 0.0
  %441 = vmatpush1.msra.mxu0 0.0
  %442 = vmatprep.subr.mxu0 0.0
  %443 = vmatpush1.msra.mxu0 0.0
  %444 = vmatprep.subr.mxu0 0.0
  %445 = vmatpush1.msra.mxu0 0.0
  %446 = vmatprep.subr.mxu0 0.0
  %447 = vmatpush1.msra.mxu0 0.0
  %448 = vmatprep.subr.mxu0 0.0
  %449 = vmatpush1.msra.mxu0 0.0
  %450 = vmatprep.subr.mxu0 0.0
  %451 = vmatpush1.msra.mxu0 0.0
  %452 = vmatprep.subr.mxu0 0.0
  %453 = vmatpush1.msra.mxu0 0.0
  %454 = vmatprep.subr.mxu0 0.0
  %455 = vmatpush1.msra.mxu0 0.0
  %456 = vmatprep.subr.mxu0 0.0
  %457 = vmatpush1.msra.mxu0 0.0
  %458 = vmatprep.subr.mxu0 0.0
  %459 = vmatpush1.msra.mxu0 0.0
  %460 = vmatprep.subr.mxu0 0.0
  %461 = vmatpush1.msra.mxu0 0.0
  %462 = vmatprep.subr.mxu0 0.0
  %463 = vmatpush1.msra.mxu0 0.0
  %464 = vmatprep.subr.mxu0 0.0
  %465 = vmatpush1.msra.mxu0 0.0
  %466 = vmatprep.subr.mxu0 0.0
  %467 = vmatpush1.msra.mxu0 0.0
  %468 = vmatprep.subr.mxu0 0.0
  %469 = vmatpush1.msra.mxu0 0.0
  %470 = vmatprep.subr.mxu0 0.0
  %471 = vmatpush1.msra.mxu0 0.0
  %472 = vmatprep.subr.mxu0 0.0
  %473 = vmatpush1.msra.mxu0 0.0
  %474 = vmatprep.subr.mxu0 0.0
  %475 = vmatpush1.msra.mxu0 0.0
  %476 = vmatprep.subr.mxu0 0.0
  %477 = vmatpush1.msra.mxu0 0.0
  %478 = vmatprep.subr.mxu0 0.0
  %479 = vmatpush1.msra.mxu0 0.0
  %480 = vmatprep.subr.mxu0 0.0
  %481 = vmatpush1.msra.mxu0 0.0
  %482 = vmatprep.subr.mxu0 0.0
  %483 = vmatpush1.msra.mxu0 0.0
  %484 = vmatprep.subr.mxu0 0.0
  %485 = vmatpush1.msra.mxu0 0.0
  %486 = vmatprep.subr.mxu0 0.0
  %487 = vmatpush1.msra.mxu0 0.0
  %488 = vmatprep.subr.mxu0 0.0
  %489 = vmatpush1.msra.mxu0 0.0
  %490 = vmatprep.subr.mxu0 0.0
  %491 = vmatpush1.msra.mxu0 0.0
  %492 = vmatprep.subr.mxu0 0.0
  %493 = vmatpush1.msra.mxu0 0.0
  %494 = vmatprep.mubr.f32.mxu0 0.0
  %495 = vmatmul.mubr.f32.gmra.mrb[0].mxu0 %v425
  %v496 = vpop.f32.mrb[0].mxu0
  %v497 = vadd.f32 %v148, %v496
  %v498 = vpop.f32.mrb[0].mxu0
  %499 = vmatprep.mubr.f32.mxu0 0.0
  %500 = vmatmul.mubr.f32.gmra.mrb[0].mxu0 %v428
  %v501 = vpop.f32.mrb[0].mxu0
  %v502 = vadd.f32 %v148, %v501
  %v503 = vpop.f32.mrb[0].mxu0
  %504 = vdwg.mxu0
  %v505 = vtanh.pop %v497
  %v506 = vtanh.pop %v502
  %509 = vrot.lane.b32.xlu0 %v505, 32
  %v510 = vpop.permute.xlu0 %509
  %511 = vrot.lane.b32.xlu0 %v506, 32
  %v512 = vpop.permute.xlu0 %511
  %v515 = vsel %vm150, %v422, %v510
  %v516 = vsel %vm150, %v423, %v512
  %v518 = vsel %vm46, %v515, 0
  %v521 = vsel %vm46, %v516, 0
  %523 = vmatprep.subr.mxu0 0.0
  %524 = vmatpush1.msra.mxu0 %v244
  %525 = vmatprep.subr.mxu0 0.0
  %526 = vmatpush1.msra.mxu0 %v245
  %527 = vmatprep.subr.mxu0 0.0
  %528 = vmatpush1.msra.mxu0 %v246
  %529 = vmatprep.subr.mxu0 0.0
  %530 = vmatpush1.msra.mxu0 %v247
  %531 = vmatprep.subr.mxu0 0.0
  %532 = vmatpush1.msra.mxu0 %v248
  %533 = vmatprep.subr.mxu0 0.0
  %534 = vmatpush1.msra.mxu0 %v249
  %535 = vmatprep.subr.mxu0 0.0
  %536 = vmatpush1.msra.mxu0 0.0
  %537 = vmatprep.subr.mxu0 0.0
  %538 = vmatpush1.msra.mxu0 0.0
  %539 = vmatprep.subr.mxu0 0.0
  %540 = vmatpush1.msra.mxu0 0.0
  %541 = vmatprep.subr.mxu0 0.0
  %542 = vmatpush1.msra.mxu0 0.0
  %543 = vmatprep.subr.mxu0 0.0
  %544 = vmatpush1.msra.mxu0 0.0
  %545 = vmatprep.subr.mxu0 0.0
  %546 = vmatpush1.msra.mxu0 0.0
  %547 = vmatprep.subr.mxu0 0.0
  %548 = vmatpush1.msra.mxu0 0.0
  %549 = vmatprep.subr.mxu0 0.0
  %550 = vmatpush1.msra.mxu0 0.0
  %551 = vmatprep.subr.mxu0 0.0
  %552 = vmatpush1.msra.mxu0 0.0
  %553 = vmatprep.subr.mxu0 0.0
  %554 = vmatpush1.msra.mxu0 0.0
  %555 = vmatprep.subr.mxu0 0.0
  %556 = vmatpush1.msra.mxu0 0.0
  %557 = vmatprep.subr.mxu0 0.0
  %558 = vmatpush1.msra.mxu0 0.0
  %559 = vmatprep.subr.mxu0 0.0
  %560 = vmatpush1.msra.mxu0 0.0
  %561 = vmatprep.subr.mxu0 0.0
  %562 = vmatpush1.msra.mxu0 0.0
  %563 = vmatprep.subr.mxu0 0.0
  %564 = vmatpush1.msra.mxu0 0.0
  %565 = vmatprep.subr.mxu0 0.0
  %566 = vmatpush1.msra.mxu0 0.0
  %567 = vmatprep.subr.mxu0 0.0
  %568 = vmatpush1.msra.mxu0 0.0
  %569 = vmatprep.subr.mxu0 0.0
  %570 = vmatpush1.msra.mxu0 0.0
  %571 = vmatprep.subr.mxu0 0.0
  %572 = vmatpush1.msra.mxu0 0.0
  %573 = vmatprep.subr.mxu0 0.0
  %574 = vmatpush1.msra.mxu0 0.0
  %575 = vmatprep.subr.mxu0 0.0
  %576 = vmatpush1.msra.mxu0 0.0
  %577 = vmatprep.subr.mxu0 0.0
  %578 = vmatpush1.msra.mxu0 0.0
  %579 = vmatprep.subr.mxu0 0.0
  %580 = vmatpush1.msra.mxu0 0.0
  %581 = vmatprep.subr.mxu0 0.0
  %582 = vmatpush1.msra.mxu0 0.0
  %583 = vmatprep.subr.mxu0 0.0
  %584 = vmatpush1.msra.mxu0 0.0
  %585 = vmatprep.subr.mxu0 0.0
  %586 = vmatpush1.msra.mxu0 0.0
  %587 = vmatprep.mubr.f32.mxu0 0.0
  %588 = vmatmul.mubr.f32.gmra.mrb[0].mxu0 %v518
  %v589 = vpop.f32.mrb[0].mxu0
  %v590 = vadd.f32 %v255, %v589
  %v591 = vpop.f32.mrb[0].mxu0
  %592 = vmatprep.mubr.f32.mxu0 0.0
  %593 = vmatmul.mubr.f32.gmra.mrb[0].mxu0 %v521
  %v594 = vpop.f32.mrb[0].mxu0
  %v595 = vadd.f32 %v255, %v594
  %v596 = vpop.f32.mrb[0].mxu0
  %597 = vdwg.mxu0
  %v598 = vmax.f32 %v590, 0.0
  %v599 = vmax.f32 %v595, 0.0
  %v600 = vadd.f32 %v340, %v598
  %v601 = vadd.f32 %v341, %v599
  %s602 = scalar_lea.vmem %s1, 32
  %v603 = vld [vmem:[%s602] sm:$0xff]
  %v604 = vld [vmem:[%s602 + $0x8] sm:$0xff]
  %605 = vmatprep.subr.mxu0 0.0
  %606 = vmatpush1.msra.mxu0 %v38
  %607 = vmatprep.subr.mxu0 0.0
  %608 = vmatpush1.msra.mxu0 %v39
  %609 = vmatprep.subr.mxu0 0.0
  %610 = vmatpush1.msra.mxu0 %v40
  %611 = vmatprep.subr.mxu0 0.0
  %612 = vmatpush1.msra.mxu0 %v41
  %613 = vmatprep.subr.mxu0 0.0
  %614 = vmatpush1.msra.mxu0 %v42
  %615 = vmatprep.subr.mxu0 0.0
  %616 = vmatpush1.msra.mxu0 %v43
  %617 = vmatprep.subr.mxu0 0.0
  %618 = vmatpush1.msra.mxu0 0.0
  %619 = vmatprep.subr.mxu0 0.0
  %620 = vmatpush1.msra.mxu0 0.0
  %621 = vmatprep.subr.mxu0 0.0
  %622 = vmatpush1.msra.mxu0 0.0
  %623 = vmatprep.subr.mxu0 0.0
  %624 = vmatpush1.msra.mxu0 0.0
  %625 = vmatprep.subr.mxu0 0.0
  %626 = vmatpush1.msra.mxu0 0.0
  %627 = vmatprep.subr.mxu0 0.0
  %628 = vmatpush1.msra.mxu0 0.0
  %629 = vmatprep.subr.mxu0 0.0
  %630 = vmatpush1.msra.mxu0 0.0
  %631 = vmatprep.subr.mxu0 0.0
  %632 = vmatpush1.msra.mxu0 0.0
  %633 = vmatprep.subr.mxu0 0.0
  %634 = vmatpush1.msra.mxu0 0.0
  %635 = vmatprep.subr.mxu0 0.0
  %636 = vmatpush1.msra.mxu0 0.0
  %637 = vmatprep.subr.mxu0 0.0
  %638 = vmatpush1.msra.mxu0 0.0
  %639 = vmatprep.subr.mxu0 0.0
  %640 = vmatpush1.msra.mxu0 0.0
  %641 = vmatprep.subr.mxu0 0.0
  %642 = vmatpush1.msra.mxu0 0.0
  %643 = vmatprep.subr.mxu0 0.0
  %644 = vmatpush1.msra.mxu0 0.0
  %645 = vmatprep.subr.mxu0 0.0
  %646 = vmatpush1.msra.mxu0 0.0
  %647 = vmatprep.subr.mxu0 0.0
  %648 = vmatpush1.msra.mxu0 0.0
  %649 = vmatprep.subr.mxu0 0.0
  %650 = vmatpush1.msra.mxu0 0.0
  %651 = vmatprep.subr.mxu0 0.0
  %652 = vmatpush1.msra.mxu0 0.0
  %653 = vmatprep.subr.mxu0 0.0
  %654 = vmatpush1.msra.mxu0 0.0
  %655 = vmatprep.subr.mxu0 0.0
  %656 = vmatpush1.msra.mxu0 0.0
  %657 = vmatprep.subr.mxu0 0.0
  %658 = vmatpush1.msra.mxu0 0.0
  %659 = vmatprep.subr.mxu0 0.0
  %660 = vmatpush1.msra.mxu0 0.0
  %661 = vmatprep.subr.mxu0 0.0
  %662 = vmatpush1.msra.mxu0 0.0
  %663 = vmatprep.subr.mxu0 0.0
  %664 = vmatpush1.msra.mxu0 0.0
  %665 = vmatprep.subr.mxu0 0.0
  %666 = vmatpush1.msra.mxu0 0.0
  %667 = vmatprep.subr.mxu0 0.0
  %668 = vmatpush1.msra.mxu0 0.0
  %669 = vmatprep.mubr.f32.mxu0 0.0
  %670 = vmatmul.mubr.f32.gmra.mrb[0].mxu0 %v518
  %v671 = vpop.f32.mrb[0].mxu0
  %v672 = vadd.f32 %v603, %v671
  %v673 = vpop.f32.mrb[0].mxu0
  %674 = vmatprep.mubr.f32.mxu0 0.0
  %675 = vmatmul.mubr.f32.gmra.mrb[0].mxu0 %v521
  %v676 = vpop.f32.mrb[0].mxu0
  %v677 = vadd.f32 %v604, %v676
  %v678 = vpop.f32.mrb[0].mxu0
  %679 = vdwg.mxu0
  %v680 = vadd.f32 %v672, %v133
  %v681 = vadd.f32 %v677, %v133
  %v682 = vtanh.pop %v680
  %v683 = vtanh.pop %v681
  %v685 = vsel %vm150, %v682, 0
  %v688 = vsel %vm150, %v683, 0
  %690 = vmatprep.subr.mxu0 0.0
  %691 = vmatpush1.msra.mxu0 %v139
  %692 = vmatprep.subr.mxu0 0.0
  %693 = vmatpush1.msra.mxu0 %v140
  %694 = vmatprep.subr.mxu0 0.0
  %695 = vmatpush1.msra.mxu0 %v141
  %696 = vmatprep.subr.mxu0 0.0
  %697 = vmatpush1.msra.mxu0 %v142
  %698 = vmatprep.subr.mxu0 0.0
  %699 = vmatpush1.msra.mxu0 0.0
  %700 = vmatprep.subr.mxu0 0.0
  %701 = vmatpush1.msra.mxu0 0.0
  %702 = vmatprep.subr.mxu0 0.0
  %703 = vmatpush1.msra.mxu0 0.0
  %704 = vmatprep.subr.mxu0 0.0
  %705 = vmatpush1.msra.mxu0 0.0
  %706 = vmatprep.subr.mxu0 0.0
  %707 = vmatpush1.msra.mxu0 0.0
  %708 = vmatprep.subr.mxu0 0.0
  %709 = vmatpush1.msra.mxu0 0.0
  %710 = vmatprep.subr.mxu0 0.0
  %711 = vmatpush1.msra.mxu0 0.0
  %712 = vmatprep.subr.mxu0 0.0
  %713 = vmatpush1.msra.mxu0 0.0
  %714 = vmatprep.subr.mxu0 0.0
  %715 = vmatpush1.msra.mxu0 0.0
  %716 = vmatprep.subr.mxu0 0.0
  %717 = vmatpush1.msra.mxu0 0.0
  %718 = vmatprep.subr.mxu0 0.0
  %719 = vmatpush1.msra.mxu0 0.0
  %720 = vmatprep.subr.mxu0 0.0
  %721 = vmatpush1.msra.mxu0 0.0
  %722 = vmatprep.subr.mxu0 0.0
  %723 = vmatpush1.msra.mxu0 0.0
  %724 = vmatprep.subr.mxu0 0.0
  %725 = vmatpush1.msra.mxu0 0.0
  %726 = vmatprep.subr.mxu0 0.0
  %727 = vmatpush1.msra.mxu0 0.0
  %728 = vmatprep.subr.mxu0 0.0
  %729 = vmatpush1.msra.mxu0 0.0
  %730 = vmatprep.subr.mxu0 0.0
  %731 = vmatpush1.msra.mxu0 0.0
  %732 = vmatprep.subr.mxu0 0.0
  %733 = vmatpush1.msra.mxu0 0.0
  %734 = vmatprep.subr.mxu0 0.0
  %735 = vmatpush1.msra.mxu0 0.0
  %736 = vmatprep.subr.mxu0 0.0
  %737 = vmatpush1.msra.mxu0 0.0
  %738 = vmatprep.subr.mxu0 0.0
  %739 = vmatpush1.msra.mxu0 0.0
  %740 = vmatprep.subr.mxu0 0.0
  %741 = vmatpush1.msra.mxu0 0.0
  %742 = vmatprep.subr.mxu0 0.0
  %743 = vmatpush1.msra.mxu0 0.0
  %744 = vmatprep.subr.mxu0 0.0
  %745 = vmatpush1.msra.mxu0 0.0
  %746 = vmatprep.subr.mxu0 0.0
  %747 = vmatpush1.msra.mxu0 0.0
  %748 = vmatprep.subr.mxu0 0.0
  %749 = vmatpush1.msra.mxu0 0.0
  %750 = vmatprep.subr.mxu0 0.0
  %751 = vmatpush1.msra.mxu0 0.0
  %752 = vmatprep.subr.mxu0 0.0
  %753 = vmatpush1.msra.mxu0 0.0
  %754 = vmatprep.mubr.f32.mxu0 0.0
  %755 = vmatmul.mubr.f32.gmra.mrb[0].mxu0 %v685
  %v756 = vpop.f32.mrb[0].mxu0
  %v757 = vadd.f32 %v148, %v756
  %v758 = vpop.f32.mrb[0].mxu0
  %759 = vmatprep.mubr.f32.mxu0 0.0
  %760 = vmatmul.mubr.f32.gmra.mrb[0].mxu0 %v688
  %v761 = vpop.f32.mrb[0].mxu0
  %v762 = vadd.f32 %v148, %v761
  %v763 = vpop.f32.mrb[0].mxu0
  %764 = vdwg.mxu0
  %v765 = vtanh.pop %v757
  %v766 = vtanh.pop %v762
  %769 = vrot.lane.b32.xlu0 %v765, 32
  %v770 = vpop.permute.xlu0 %769
  %771 = vrot.lane.b32.xlu0 %v766, 32
  %v772 = vpop.permute.xlu0 %771
  %v775 = vsel %vm150, %v682, %v770
  %v776 = vsel %vm150, %v683, %v772
  %v778 = vsel %vm46, %v775, 0
  %v781 = vsel %vm46, %v776, 0
  %783 = vmatprep.subr.mxu0 0.0
  %784 = vmatpush1.msra.mxu0 %v244
  %785 = vmatprep.subr.mxu0 0.0
  %786 = vmatpush1.msra.mxu0 %v245
  %787 = vmatprep.subr.mxu0 0.0
  %788 = vmatpush1.msra.mxu0 %v246
  %789 = vmatprep.subr.mxu0 0.0
  %790 = vmatpush1.msra.mxu0 %v247
  %791 = vmatprep.subr.mxu0 0.0
  %792 = vmatpush1.msra.mxu0 %v248
  %793 = vmatprep.subr.mxu0 0.0
  %794 = vmatpush1.msra.mxu0 %v249
  %795 = vmatprep.subr.mxu0 0.0
  %796 = vmatpush1.msra.mxu0 0.0
  %797 = vmatprep.subr.mxu0 0.0
  %798 = vmatpush1.msra.mxu0 0.0
  %799 = vmatprep.subr.mxu0 0.0
  %800 = vmatpush1.msra.mxu0 0.0
  %801 = vmatprep.subr.mxu0 0.0
  %802 = vmatpush1.msra.mxu0 0.0
  %803 = vmatprep.subr.mxu0 0.0
  %804 = vmatpush1.msra.mxu0 0.0
  %805 = vmatprep.subr.mxu0 0.0
  %806 = vmatpush1.msra.mxu0 0.0
  %807 = vmatprep.subr.mxu0 0.0
  %808 = vmatpush1.msra.mxu0 0.0
  %809 = vmatprep.subr.mxu0 0.0
  %810 = vmatpush1.msra.mxu0 0.0
  %811 = vmatprep.subr.mxu0 0.0
  %812 = vmatpush1.msra.mxu0 0.0
  %813 = vmatprep.subr.mxu0 0.0
  %814 = vmatpush1.msra.mxu0 0.0
  %815 = vmatprep.subr.mxu0 0.0
  %816 = vmatpush1.msra.mxu0 0.0
  %817 = vmatprep.subr.mxu0 0.0
  %818 = vmatpush1.msra.mxu0 0.0
  %819 = vmatprep.subr.mxu0 0.0
  %820 = vmatpush1.msra.mxu0 0.0
  %821 = vmatprep.subr.mxu0 0.0
  %822 = vmatpush1.msra.mxu0 0.0
  %823 = vmatprep.subr.mxu0 0.0
  %824 = vmatpush1.msra.mxu0 0.0
  %825 = vmatprep.subr.mxu0 0.0
  %826 = vmatpush1.msra.mxu0 0.0
  %827 = vmatprep.subr.mxu0 0.0
  %828 = vmatpush1.msra.mxu0 0.0
  %829 = vmatprep.subr.mxu0 0.0
  %830 = vmatpush1.msra.mxu0 0.0
  %831 = vmatprep.subr.mxu0 0.0
  %832 = vmatpush1.msra.mxu0 0.0
  %833 = vmatprep.subr.mxu0 0.0
  %834 = vmatpush1.msra.mxu0 0.0
  %835 = vmatprep.subr.mxu0 0.0
  %836 = vmatpush1.msra.mxu0 0.0
  %837 = vmatprep.subr.mxu0 0.0
  %838 = vmatpush1.msra.mxu0 0.0
  %839 = vmatprep.subr.mxu0 0.0
  %840 = vmatpush1.msra.mxu0 0.0
  %841 = vmatprep.subr.mxu0 0.0
  %842 = vmatpush1.msra.mxu0 0.0
  %843 = vmatprep.subr.mxu0 0.0
  %844 = vmatpush1.msra.mxu0 0.0
  %845 = vmatprep.subr.mxu0 0.0
  %846 = vmatpush1.msra.mxu0 0.0
  %847 = vmatprep.mubr.f32.mxu0 0.0
  %848 = vmatmul.mubr.f32.gmra.mrb[0].mxu0 %v778
  %v849 = vpop.f32.mrb[0].mxu0
  %v850 = vadd.f32 %v255, %v849
  %v851 = vpop.f32.mrb[0].mxu0
  %852 = vmatprep.mubr.f32.mxu0 0.0
  %853 = vmatmul.mubr.f32.gmra.mrb[0].mxu0 %v781
  %v854 = vpop.f32.mrb[0].mxu0
  %v855 = vadd.f32 %v255, %v854
  %v856 = vpop.f32.mrb[0].mxu0
  %857 = vdwg.mxu0
  %v858 = vmax.f32 %v850, 0.0
  %v859 = vmax.f32 %v855, 0.0
  %v860 = vadd.f32 %v600, %v858
  %v861 = vadd.f32 %v601, %v859
  %s862 = scalar_lea.vmem %s1, 48
  %v863 = vld [vmem:[%s862] sm:$0xff]
  %v864 = vld [vmem:[%s862 + $0x8] sm:$0xff]
  %865 = vmatprep.subr.mxu0 0.0
  %866 = vmatpush1.msra.mxu0 %v38
  %867 = vmatprep.subr.mxu0 0.0
  %868 = vmatpush1.msra.mxu0 %v39
  %869 = vmatprep.subr.mxu0 0.0
  %870 = vmatpush1.msra.mxu0 %v40
  %871 = vmatprep.subr.mxu0 0.0
  %872 = vmatpush1.msra.mxu0 %v41
  %873 = vmatprep.subr.mxu0 0.0
  %874 = vmatpush1.msra.mxu0 %v42
  %875 = vmatprep.subr.mxu0 0.0
  %876 = vmatpush1.msra.mxu0 %v43
  %877 = vmatprep.subr.mxu0 0.0
  %878 = vmatpush1.msra.mxu0 0.0
  %879 = vmatprep.subr.mxu0 0.0
  %880 = vmatpush1.msra.mxu0 0.0
  %881 = vmatprep.subr.mxu0 0.0
  %882 = vmatpush1.msra.mxu0 0.0
  %883 = vmatprep.subr.mxu0 0.0
  %884 = vmatpush1.msra.mxu0 0.0
  %885 = vmatprep.subr.mxu0 0.0
  %886 = vmatpush1.msra.mxu0 0.0
  %887 = vmatprep.subr.mxu0 0.0
  %888 = vmatpush1.msra.mxu0 0.0
  %889 = vmatprep.subr.mxu0 0.0
  %890 = vmatpush1.msra.mxu0 0.0
  %891 = vmatprep.subr.mxu0 0.0
  %892 = vmatpush1.msra.mxu0 0.0
  %893 = vmatprep.subr.mxu0 0.0
  %894 = vmatpush1.msra.mxu0 0.0
  %895 = vmatprep.subr.mxu0 0.0
  %896 = vmatpush1.msra.mxu0 0.0
  %897 = vmatprep.subr.mxu0 0.0
  %898 = vmatpush1.msra.mxu0 0.0
  %899 = vmatprep.subr.mxu0 0.0
  %900 = vmatpush1.msra.mxu0 0.0
  %901 = vmatprep.subr.mxu0 0.0
  %902 = vmatpush1.msra.mxu0 0.0
  %903 = vmatprep.subr.mxu0 0.0
  %904 = vmatpush1.msra.mxu0 0.0
  %905 = vmatprep.subr.mxu0 0.0
  %906 = vmatpush1.msra.mxu0 0.0
  %907 = vmatprep.subr.mxu0 0.0
  %908 = vmatpush1.msra.mxu0 0.0
  %909 = vmatprep.subr.mxu0 0.0
  %910 = vmatpush1.msra.mxu0 0.0
  %911 = vmatprep.subr.mxu0 0.0
  %912 = vmatpush1.msra.mxu0 0.0
  %913 = vmatprep.subr.mxu0 0.0
  %914 = vmatpush1.msra.mxu0 0.0
  %915 = vmatprep.subr.mxu0 0.0
  %916 = vmatpush1.msra.mxu0 0.0
  %917 = vmatprep.subr.mxu0 0.0
  %918 = vmatpush1.msra.mxu0 0.0
  %919 = vmatprep.subr.mxu0 0.0
  %920 = vmatpush1.msra.mxu0 0.0
  %921 = vmatprep.subr.mxu0 0.0
  %922 = vmatpush1.msra.mxu0 0.0
  %923 = vmatprep.subr.mxu0 0.0
  %924 = vmatpush1.msra.mxu0 0.0
  %925 = vmatprep.subr.mxu0 0.0
  %926 = vmatpush1.msra.mxu0 0.0
  %927 = vmatprep.subr.mxu0 0.0
  %928 = vmatpush1.msra.mxu0 0.0
  %929 = vmatprep.mubr.f32.mxu0 0.0
  %930 = vmatmul.mubr.f32.gmra.mrb[0].mxu0 %v778
  %v931 = vpop.f32.mrb[0].mxu0
  %v932 = vadd.f32 %v863, %v931
  %v933 = vpop.f32.mrb[0].mxu0
  %934 = vmatprep.mubr.f32.mxu0 0.0
  %935 = vmatmul.mubr.f32.gmra.mrb[0].mxu0 %v781
  %v936 = vpop.f32.mrb[0].mxu0
  %v937 = vadd.f32 %v864, %v936
  %v938 = vpop.f32.mrb[0].mxu0
  %939 = vdwg.mxu0
  %v940 = vadd.f32 %v932, %v133
  %v941 = vadd.f32 %v937, %v133
  %v942 = vtanh.pop %v940
  %v943 = vtanh.pop %v941
  %v945 = vsel %vm150, %v942, 0
  %v948 = vsel %vm150, %v943, 0
  %950 = vmatprep.subr.mxu0 0.0
  %951 = vmatpush1.msra.mxu0 %v139
  %952 = vmatprep.subr.mxu0 0.0
  %953 = vmatpush1.msra.mxu0 %v140
  %954 = vmatprep.subr.mxu0 0.0
  %955 = vmatpush1.msra.mxu0 %v141
  %956 = vmatprep.subr.mxu0 0.0
  %957 = vmatpush1.msra.mxu0 %v142
  %958 = vmatprep.subr.mxu0 0.0
  %959 = vmatpush1.msra.mxu0 0.0
  %960 = vmatprep.subr.mxu0 0.0
  %961 = vmatpush1.msra.mxu0 0.0
  %962 = vmatprep.subr.mxu0 0.0
  %963 = vmatpush1.msra.mxu0 0.0
  %964 = vmatprep.subr.mxu0 0.0
  %965 = vmatpush1.msra.mxu0 0.0
  %966 = vmatprep.subr.mxu0 0.0
  %967 = vmatpush1.msra.mxu0 0.0
  %968 = vmatprep.subr.mxu0 0.0
  %969 = vmatpush1.msra.mxu0 0.0
  %970 = vmatprep.subr.mxu0 0.0
  %971 = vmatpush1.msra.mxu0 0.0
  %972 = vmatprep.subr.mxu0 0.0
  %973 = vmatpush1.msra.mxu0 0.0
  %974 = vmatprep.subr.mxu0 0.0
  %975 = vmatpush1.msra.mxu0 0.0
  %976 = vmatprep.subr.mxu0 0.0
  %977 = vmatpush1.msra.mxu0 0.0
  %978 = vmatprep.subr.mxu0 0.0
  %979 = vmatpush1.msra.mxu0 0.0
  %980 = vmatprep.subr.mxu0 0.0
  %981 = vmatpush1.msra.mxu0 0.0
  %982 = vmatprep.subr.mxu0 0.0
  %983 = vmatpush1.msra.mxu0 0.0
  %984 = vmatprep.subr.mxu0 0.0
  %985 = vmatpush1.msra.mxu0 0.0
  %986 = vmatprep.subr.mxu0 0.0
  %987 = vmatpush1.msra.mxu0 0.0
  %988 = vmatprep.subr.mxu0 0.0
  %989 = vmatpush1.msra.mxu0 0.0
  %990 = vmatprep.subr.mxu0 0.0
  %991 = vmatpush1.msra.mxu0 0.0
  %992 = vmatprep.subr.mxu0 0.0
  %993 = vmatpush1.msra.mxu0 0.0
  %994 = vmatprep.subr.mxu0 0.0
  %995 = vmatpush1.msra.mxu0 0.0
  %996 = vmatprep.subr.mxu0 0.0
  %997 = vmatpush1.msra.mxu0 0.0
  %998 = vmatprep.subr.mxu0 0.0
  %999 = vmatpush1.msra.mxu0 0.0
  %1000 = vmatprep.subr.mxu0 0.0
  %1001 = vmatpush1.msra.mxu0 0.0
  %1002 = vmatprep.subr.mxu0 0.0
  %1003 = vmatpush1.msra.mxu0 0.0
  %1004 = vmatprep.subr.mxu0 0.0
  %1005 = vmatpush1.msra.mxu0 0.0
  %1006 = vmatprep.subr.mxu0 0.0
  %1007 = vmatpush1.msra.mxu0 0.0
  %1008 = vmatprep.subr.mxu0 0.0
  %1009 = vmatpush1.msra.mxu0 0.0
  %1010 = vmatprep.subr.mxu0 0.0
  %1011 = vmatpush1.msra.mxu0 0.0
  %1012 = vmatprep.subr.mxu0 0.0
  %1013 = vmatpush1.msra.mxu0 0.0
  %1014 = vmatprep.mubr.f32.mxu0 0.0
  %1015 = vmatmul.mubr.f32.gmra.mrb[0].mxu0 %v945
  %v1016 = vpop.f32.mrb[0].mxu0
  %v1017 = vadd.f32 %v148, %v1016
  %v1018 = vpop.f32.mrb[0].mxu0
  %1019 = vmatprep.mubr.f32.mxu0 0.0
  %1020 = vmatmul.mubr.f32.gmra.mrb[0].mxu0 %v948
  %v1021 = vpop.f32.mrb[0].mxu0
  %v1022 = vadd.f32 %v148, %v1021
  %v1023 = vpop.f32.mrb[0].mxu0
  %1024 = vdwg.mxu0
  %v1025 = vtanh.pop %v1017
  %v1026 = vtanh.pop %v1022
  %1029 = vrot.lane.b32.xlu0 %v1025, 32
  %v1030 = vpop.permute.xlu0 %1029
  %1031 = vrot.lane.b32.xlu0 %v1026, 32
  %v1032 = vpop.permute.xlu0 %1031
  %v1035 = vsel %vm150, %v942, %v1030
  %v1036 = vsel %vm150, %v943, %v1032
  %v1038 = vsel %vm46, %v1035, 0
  %v1041 = vsel %vm46, %v1036, 0
  %1043 = vmatprep.subr.mxu0 0.0
  %1044 = vmatpush1.msra.mxu0 %v244
  %1045 = vmatprep.subr.mxu0 0.0
  %1046 = vmatpush1.msra.mxu0 %v245
  %1047 = vmatprep.subr.mxu0 0.0
  %1048 = vmatpush1.msra.mxu0 %v246
  %1049 = vmatprep.subr.mxu0 0.0
  %1050 = vmatpush1.msra.mxu0 %v247
  %1051 = vmatprep.subr.mxu0 0.0
  %1052 = vmatpush1.msra.mxu0 %v248
  %1053 = vmatprep.subr.mxu0 0.0
  %1054 = vmatpush1.msra.mxu0 %v249
  %1055 = vmatprep.subr.mxu0 0.0
  %1056 = vmatpush1.msra.mxu0 0.0
  %1057 = vmatprep.subr.mxu0 0.0
  %1058 = vmatpush1.msra.mxu0 0.0
  %1059 = vmatprep.subr.mxu0 0.0
  %1060 = vmatpush1.msra.mxu0 0.0
  %1061 = vmatprep.subr.mxu0 0.0
  %1062 = vmatpush1.msra.mxu0 0.0
  %1063 = vmatprep.subr.mxu0 0.0
  %1064 = vmatpush1.msra.mxu0 0.0
  %1065 = vmatprep.subr.mxu0 0.0
  %1066 = vmatpush1.msra.mxu0 0.0
  %1067 = vmatprep.subr.mxu0 0.0
  %1068 = vmatpush1.msra.mxu0 0.0
  %1069 = vmatprep.subr.mxu0 0.0
  %1070 = vmatpush1.msra.mxu0 0.0
  %1071 = vmatprep.subr.mxu0 0.0
  %1072 = vmatpush1.msra.mxu0 0.0
  %1073 = vmatprep.subr.mxu0 0.0
  %1074 = vmatpush1.msra.mxu0 0.0
  %1075 = vmatprep.subr.mxu0 0.0
  %1076 = vmatpush1.msra.mxu0 0.0
  %1077 = vmatprep.subr.mxu0 0.0
  %1078 = vmatpush1.msra.mxu0 0.0
  %1079 = vmatprep.subr.mxu0 0.0
  %1080 = vmatpush1.msra.mxu0 0.0
  %1081 = vmatprep.subr.mxu0 0.0
  %1082 = vmatpush1.msra.mxu0 0.0
  %1083 = vmatprep.subr.mxu0 0.0
  %1084 = vmatpush1.msra.mxu0 0.0
  %1085 = vmatprep.subr.mxu0 0.0
  %1086 = vmatpush1.msra.mxu0 0.0
  %1087 = vmatprep.subr.mxu0 0.0
  %1088 = vmatpush1.msra.mxu0 0.0
  %1089 = vmatprep.subr.mxu0 0.0
  %1090 = vmatpush1.msra.mxu0 0.0
  %1091 = vmatprep.subr.mxu0 0.0
  %1092 = vmatpush1.msra.mxu0 0.0
  %1093 = vmatprep.subr.mxu0 0.0
  %1094 = vmatpush1.msra.mxu0 0.0
  %1095 = vmatprep.subr.mxu0 0.0
  %1096 = vmatpush1.msra.mxu0 0.0
  %1097 = vmatprep.subr.mxu0 0.0
  %1098 = vmatpush1.msra.mxu0 0.0
  %1099 = vmatprep.subr.mxu0 0.0
  %1100 = vmatpush1.msra.mxu0 0.0
  %1101 = vmatprep.subr.mxu0 0.0
  %1102 = vmatpush1.msra.mxu0 0.0
  %1103 = vmatprep.subr.mxu0 0.0
  %1104 = vmatpush1.msra.mxu0 0.0
  %1105 = vmatprep.subr.mxu0 0.0
  %1106 = vmatpush1.msra.mxu0 0.0
  %1107 = vmatprep.mubr.f32.mxu0 0.0
  %1108 = vmatmul.mubr.f32.gmra.mrb[0].mxu0 %v1038
  %v1109 = vpop.f32.mrb[0].mxu0
  %v1110 = vadd.f32 %v255, %v1109
  %v1111 = vpop.f32.mrb[0].mxu0
  %1112 = vmatprep.mubr.f32.mxu0 0.0
  %1113 = vmatmul.mubr.f32.gmra.mrb[0].mxu0 %v1041
  %v1114 = vpop.f32.mrb[0].mxu0
  %v1115 = vadd.f32 %v255, %v1114
  %v1116 = vpop.f32.mrb[0].mxu0
  %1117 = vdwg.mxu0
  %v1118 = vmax.f32 %v1110, 0.0
  %v1119 = vmax.f32 %v1115, 0.0
  %v1120 = vadd.f32 %v860, %v1118
  %v1121 = vadd.f32 %v861, %v1119
  %v1122 = vld [vmem:[%s8] sm:$0x1]
  %v1124 = vlaneseq
  %v1125 = vshrl.u32 %v1124, 7
  %v1126 = vsub.s32 0, %v1125
  %v1127 = vrot.slane %v1122, %v1126
  %v1129 = vmul.f32 %v1120, %v1127
  %v1130 = vmul.f32 %v1121, %v1127
  %vm1131 = vcmask 195584
  %v1132 = vsel %vm1131, %v1129, 0.0
  %1133 = vadd.xlane.f32.xlu0 %v1132
  %v1134 = vpop.xlane.xlu0 %1133
  %v1135 = vsel %vm1131, %v1130, 0.0
  %1136 = vadd.xlane.f32.xlu0 %v1135
  %v1137 = vpop.xlane.xlu0 %1136
  %s1138 = sld [smem:[#allocation2]]
  %s1139 = smul.f32 %s1138, 4.0
  %v1140 = vstv %s1139
  %v1141 = vadd.f32 %v1134, %v1140
  %v1142 = vadd.f32 %v1137, %v1140
  %vm1143 = vcmask 7168
  %1144 = vst.msk [vmem:[%s10] sm:$0xff] %vm1143, %v1141
  %1145 = vst.msk [vmem:[%s10 + $0x8] sm:$0xff] %vm1143, %v1142
  // Predicated region
  $region42: #{tpu_custom_call.1} parent=0 // pred_check
    _
  $region43: #{tpu_custom_call.1} parent=0 // pred_check_branch
    %1147 = sbr.rel (0) target = $region45
  $region44: #{tpu_custom_call.1} parent=0 // pred_region
    _
  $region45: #{tpu_custom_call.1} parent=0 // pred_fallthru
    _
  // Predicated region
  $region46: #{tpu_custom_call.1} parent=0 // pred_check
    _
  $region47: #{tpu_custom_call.1} parent=0 // pred_check_branch
    %1149 = sbr.rel (0) target = $region49
  $region48: #{tpu_custom_call.1} parent=0 // pred_region
    _
  $region49: #{tpu_custom_call.1} parent=0 // pred_fallthru
    _

</llo_original>
